<compile_context>
chip_gen: v7x
topology: tpu7x:2x2x1
jax: 0.10.0
libtpu: 0.0.40
codegen_flags: <defaults>
</compile_context>

<pallas_src>
import functools
import math

import jax
import jax.numpy as jnp
from jax.experimental import pallas as pl
from jax.experimental.pallas import tpu as pltpu


# ----------------------------- fused encoder-stack kernel -----------------------------

def _layer_norm(z, g, b):
    # PyTorch LayerNorm: biased variance, eps=1e-5, f32 math
    mu = jnp.mean(z, axis=-1, keepdims=True)
    var = jnp.mean(jnp.square(z - mu), axis=-1, keepdims=True)
    return (z - mu) * jax.lax.rsqrt(var + 1e-5) * g + b


def _encoder_stack_kernel(*refs, nheads, has_mask):
    if has_mask:
        (x_ref, mask_ref, wqkv_ref, bqkv_ref, wo_ref, bo_ref,
         ln1g_ref, ln1b_ref, w1_ref, b1_ref, w2_ref, b2_ref,
         ln2g_ref, ln2b_ref, o_ref) = refs
    else:
        (x_ref, wqkv_ref, bqkv_ref, wo_ref, bo_ref,
         ln1g_ref, ln1b_ref, w1_ref, b1_ref, w2_ref, b2_ref,
         ln2g_ref, ln2b_ref, o_ref) = refs
        mask_ref = None

    layer = pl.program_id(1)

    # Layer 0: seed the VMEM-resident carry (output block revisited across
    # the layer axis) with the embedded+PE input for this batch tile.
    @pl.when(layer == 0)
    def _():
        o_ref[...] = x_ref[...]

    x = o_ref[...]                         # [Bt, S, D] f32 layer carry
    Bt, S, D = x.shape
    dk = D // nheads

    x2 = x.reshape(Bt * S, D)

    # ---- self-attention: fused QKV matmul (bf16 MXU, f32 accum) ----
    qkv = (jnp.dot(x2.astype(jnp.bfloat16), wqkv_ref[...],
                   preferred_element_type=jnp.float32)
           + bqkv_ref[...])                # [Bt*S, 3D] f32

    def split_heads(t):                    # [Bt*S, D] -> [Bt*h, S, dk]
        t = t.reshape(Bt, S, nheads, dk)
        return jnp.swapaxes(t, 1, 2).reshape(Bt * nheads, S, dk)

    # 1/sqrt(dk) scale is pre-folded into wqkv's Q columns.
    q = split_heads(qkv[:, :D])
    k = split_heads(qkv[:, D:2 * D])
    v = split_heads(qkv[:, 2 * D:])

    # batched head contraction for scores: [Bt*h, S, S]
    s = jnp.einsum('bqd,bkd->bqk',
                   q.astype(jnp.bfloat16), k.astype(jnp.bfloat16),
                   preferred_element_type=jnp.float32)
    if has_mask:
        # TODO(synk): MultiHeadAttention source not provided; assuming a
        # key-padding mask where nonzero == attend (masked keys get -1e9).
        km = mask_ref[...]                 # [Bt, 1, S]
        bias = jnp.where(km != 0, 0.0, -1e9).astype(jnp.float32)
        s = (s.reshape(Bt, nheads, S, S) + bias[:, :, None, :]
             ).reshape(Bt * nheads, S, S)

    # softmax in f32 (reciprocal on the EUP slot)
    m = jnp.max(s, axis=-1, keepdims=True)
    p = jnp.exp(s - m)
    a = p * pl.reciprocal(jnp.sum(p, axis=-1, keepdims=True), approx=True)

    # TODO(synk): for large S, tile this over KV blocks (flash-style online
    # softmax) instead of materializing full [S, S] scores.
    ctx = jnp.einsum('bqk,bkd->bqd',
                     a.astype(jnp.bfloat16), v.astype(jnp.bfloat16),
                     preferred_element_type=jnp.float32)     # [Bt*h, S, dk]
    ctx = jnp.swapaxes(ctx.reshape(Bt, nheads, S, dk), 1, 2).reshape(Bt * S, D)

    attn = (jnp.dot(ctx.astype(jnp.bfloat16), wo_ref[...],
                    preferred_element_type=jnp.float32)
            + bo_ref[...])                 # [Bt*S, D]

    # ---- add & LayerNorm 1 (dropout1 = identity in eval) ----
    h1 = _layer_norm(x2 + attn, ln1g_ref[...], ln1b_ref[...])

    # ---- FFN: relu(h1 @ w1 + b1) @ w2 + b2 (bf16 MXU, f32 accum) ----
    mid = jnp.maximum(
        jnp.dot(h1.astype(jnp.bfloat16), w1_ref[...],
                preferred_element_type=jnp.float32) + b1_ref[...],
        0.0)
    ff = (jnp.dot(mid.astype(jnp.bfloat16), w2_ref[...],
                  preferred_element_type=jnp.float32)
          + b2_ref[...])

    # ---- add & LayerNorm 2 (dropout2 = identity in eval) ----
    y = _layer_norm(h1 + ff, ln2g_ref[...], ln2b_ref[...])

    o_ref[...] = y.reshape(Bt, S, D)       # carry to next layer / final output


def encoder_stack(x, p, nheads, mask=None, bt=None):
    """x: [B, S, D] f32 embedded+PE activations; p: prepared stacked params."""
    B, S, D = x.shape
    NL = p["wqkv"].shape[0]
    F = p["w1"].shape[-1]
    if bt is None:
        # Largest batch tile that still leaves a parallel grid axis of >= 2
        # for the two TensorCores on v7x; on v5e/v6e bigger bt is fine too.
        bt = max(1, B // 2)
    assert B % bt == 0
    has_mask = mask is not None

    kernel = functools.partial(_encoder_stack_kernel,
                               nheads=nheads, has_mask=has_mask)

    def w_spec(shape):
        # per-layer weight block: indexed by the layer grid coordinate only
        return pl.BlockSpec((None,) + shape, lambda b, l: (l, 0, 0))

    x_spec = pl.BlockSpec((bt, S, D), lambda b, l: (b, 0, 0))

    in_specs = [x_spec]
    inputs = [x]
    if has_mask:
        # compact [B, S] key-padding mask; additive bias is built in-kernel
        km = mask.reshape(B, 1, S).astype(jnp.int32)
        in_specs.append(pl.BlockSpec((bt, 1, S), lambda b, l: (b, 0, 0)))
        inputs.append(km)

    in_specs += [
        w_spec((D, 3 * D)), w_spec((1, 3 * D)),     # wqkv (bf16), bqkv (f32)
        w_spec((D, D)),     w_spec((1, D)),         # wo (bf16), bo (f32)
        w_spec((1, D)),     w_spec((1, D)),         # ln1 gamma, beta
        w_spec((D, F)),     w_spec((1, F)),         # ff w1 (bf16), b1
        w_spec((F, D)),     w_spec((1, D)),         # ff w2 (bf16), b2
        w_spec((1, D)),     w_spec((1, D)),         # ln2 gamma, beta
    ]
    inputs += [p["wqkv"], p["bqkv"], p["wo"], p["bo"],
               p["ln1_g"], p["ln1_b"],
               p["w1"], p["b1"], p["w2"], p["b2"],
               p["ln2_g"], p["ln2_b"]]

    return pl.pallas_call(
        kernel,
        out_shape=jax.ShapeDtypeStruct((B, S, D), jnp.float32),
        grid=(B // bt, NL),
        in_specs=in_specs,
        out_specs=pl.BlockSpec((bt, S, D), lambda b, l: (b, 0, 0)),
        compiler_params=pltpu.CompilerParams(
            dimension_semantics=("parallel", "arbitrary"),
            # 48 MiB: above the 16/32 MiB scoped defaults (v5e/v6e) while
            # leaving headroom on v7x's 64 MiB physical VMEM.
            vmem_limit_bytes=48 * 1024 * 1024),
    )(*inputs)


# ----------------------------- model glue (plain JAX) -----------------------------

def encoder_forward(params, x_tokens, nheads, mask=None):
    B, S = x_tokens.shape
    # TODO(synk): embedding gather kept as plain-JAX glue (data-dependent
    # gather; would need a manual DMA gather inside Pallas).
    emb = jnp.take(params["embedding"], x_tokens, axis=0)        # [B, S, D]
    y = emb + params["pe"][:S][None, :, :]
    return encoder_stack(y, params, nheads, mask=mask)


# ----------------------------- params -----------------------------

def _sinusoidal_pe(max_len, d_model):
    pos = jnp.arange(max_len, dtype=jnp.float32)[:, None]
    i = jnp.arange(d_model)[None, :]
    angle = pos / jnp.power(10000.0, (2.0 * (i // 2)) / d_model)
    return jnp.where(i % 2 == 0, jnp.sin(angle), jnp.cos(angle)).astype(jnp.float32)


def init_params(key, depth_source, NL, d_model, d_ff, max_len):
    ks = jax.random.split(key, 5)

    def w(k, shape):
        return 0.02 * jax.random.normal(k, shape, jnp.float32)

    emb = w(ks[0], (depth_source, d_model)).at[0].set(0.0)       # padding_idx=0

    return dict(
        embedding=emb,
        pe=_sinusoidal_pe(max_len, d_model),
        # per-layer params stacked along a leading layer axis
        wqkv=w(ks[1], (NL, d_model, 3 * d_model)),
        bqkv=jnp.zeros((NL, 1, 3 * d_model), jnp.float32),
        wo=w(ks[2], (NL, d_model, d_model)),
        bo=jnp.zeros((NL, 1, d_model), jnp.float32),
        ln1_g=jnp.ones((NL, 1, d_model), jnp.float32),
        ln1_b=jnp.zeros((NL, 1, d_model), jnp.float32),
        w1=w(ks[3], (NL, d_model, d_ff)),
        b1=jnp.zeros((NL, 1, d_ff), jnp.float32),
        w2=w(ks[4], (NL, d_ff, d_model)),
        b2=jnp.zeros((NL, 1, d_model), jnp.float32),
        ln2_g=jnp.ones((NL, 1, d_model), jnp.float32),
        ln2_b=jnp.zeros((NL, 1, d_model), jnp.float32),
    )


def prepare_params(p, nheads):
    """One-time prep: fold 1/sqrt(dk) into Q columns, cast big weights to bf16."""
    D = p["wqkv"].shape[1]
    dk = D // nheads
    scale = 1.0 / math.sqrt(dk)
    q = dict(p)
    q["wqkv"] = p["wqkv"].at[:, :, :D].multiply(scale).astype(jnp.bfloat16)
    q["bqkv"] = p["bqkv"].at[:, :, :D].multiply(scale)           # stays f32
    q["wo"] = p["wo"].astype(jnp.bfloat16)
    q["w1"] = p["w1"].astype(jnp.bfloat16)
    q["w2"] = p["w2"].astype(jnp.bfloat16)
    return q


# ----------------------------- main -----------------------------

if __name__ == "__main__":
    depth_source = 16
    NL = 2            # encoder layers
    h = 4             # attention heads
    d_model = 128     # multiple of 128 -> lane-dense stores
    d_ff = 256
    max_len = 16
    B, S = 2, 8

    key = jax.random.PRNGKey(0)
    kp, kx = jax.random.split(key, 2)

    params = prepare_params(
        init_params(kp, depth_source, NL, d_model, d_ff, max_len), h)
    x_tokens = jax.random.randint(kx, (B, S), 0, depth_source, dtype=jnp.int32)

    out = encoder_forward(params, x_tokens, h, mask=None)
    out = jax.block_until_ready(out)
    assert out.shape == (B, S, d_model)
    assert bool(jnp.all(jnp.isfinite(out)))
    print("KERNEL_OK")
</pallas_src>

<mosaic_0001>
module attributes {stable_mosaic.version = 11 : i64} {
  func.func @_encoder_stack_kernel(%arg0: i32, %arg1: i32, %arg2: memref<1x8x128xf32, #tpu.memory_space<vmem>>, %arg3: memref<1x128x384xbf16, #tpu.memory_space<vmem>>, %arg4: memref<1x1x384xf32, #tpu.memory_space<vmem>>, %arg5: memref<1x128x128xbf16, #tpu.memory_space<vmem>>, %arg6: memref<1x1x128xf32, #tpu.memory_space<vmem>>, %arg7: memref<1x1x128xf32, #tpu.memory_space<vmem>>, %arg8: memref<1x1x128xf32, #tpu.memory_space<vmem>>, %arg9: memref<1x128x256xbf16, #tpu.memory_space<vmem>>, %arg10: memref<1x1x256xf32, #tpu.memory_space<vmem>>, %arg11: memref<1x256x128xbf16, #tpu.memory_space<vmem>>, %arg12: memref<1x1x128xf32, #tpu.memory_space<vmem>>, %arg13: memref<1x1x128xf32, #tpu.memory_space<vmem>>, %arg14: memref<1x1x128xf32, #tpu.memory_space<vmem>>, %arg15: memref<1x8x128xf32, #tpu.memory_space<vmem>>) attributes {dimension_semantics = [#tpu.dimension_semantics<parallel>, #tpu.dimension_semantics<arbitrary>], iteration_bounds = array<i64: 2, 2>, scalar_prefetch = 0 : i64, scratch_operands = 0 : i64, tpu.core_type = #tpu.core_type<tc>, window_params = [{transform_indices = @transform_0, window_bounds = array<i64: 1, 8, 128>}, {transform_indices = @transform_1, window_bounds = array<i64: 1, 128, 384>}, {transform_indices = @transform_2, window_bounds = array<i64: 1, 1, 384>}, {transform_indices = @transform_3, window_bounds = array<i64: 1, 128, 128>}, {transform_indices = @transform_4, window_bounds = array<i64: 1, 1, 128>}, {transform_indices = @transform_5, window_bounds = array<i64: 1, 1, 128>}, {transform_indices = @transform_6, window_bounds = array<i64: 1, 1, 128>}, {transform_indices = @transform_7, window_bounds = array<i64: 1, 128, 256>}, {transform_indices = @transform_8, window_bounds = array<i64: 1, 1, 256>}, {transform_indices = @transform_9, window_bounds = array<i64: 1, 256, 128>}, {transform_indices = @transform_10, window_bounds = array<i64: 1, 1, 128>}, {transform_indices = @transform_11, window_bounds = array<i64: 1, 1, 128>}, {transform_indices = @transform_12, window_bounds = array<i64: 1, 1, 128>}, {transform_indices = @transform_13, window_bounds = array<i64: 1, 8, 128>}]} {
    %c0_i32 = arith.constant 0 : i32
    %0 = arith.cmpi eq, %arg1, %c0_i32 : i32
    %1 = arith.extui %0 : i1 to i32
    %c0_i32_0 = arith.constant 0 : i32
    %2 = arith.cmpi ne, %1, %c0_i32_0 : i32
    scf.if %2 {
      %c0_60 = arith.constant 0 : index
      %c0_61 = arith.constant 0 : index
      %c0_62 = arith.constant 0 : index
      %126 = vector.load %arg2[%c0_60, %c0_61, %c0_62] : memref<1x8x128xf32, #tpu.memory_space<vmem>>, vector<1x8x128xf32>
      %c0_63 = arith.constant 0 : index
      %c0_64 = arith.constant 0 : index
      %c0_65 = arith.constant 0 : index
      %127 = vector.load %arg15[%c0_63, %c0_64, %c0_65] : memref<1x8x128xf32, #tpu.memory_space<vmem>>, vector<1x8x128xf32>
      tpu.vector_store %arg15[%c0_63, %c0_64, %c0_65], %126 {strides = array<i32>} : memref<1x8x128xf32, #tpu.memory_space<vmem>>, vector<1x8x128xf32>,
    } else {
    }
    %c0 = arith.constant 0 : index
    %c0_1 = arith.constant 0 : index
    %c0_2 = arith.constant 0 : index
    %3 = vector.load %arg15[%c0, %c0_1, %c0_2] : memref<1x8x128xf32, #tpu.memory_space<vmem>>, vector<1x8x128xf32>
    %4 = vector.shape_cast %3 : vector<1x8x128xf32> to vector<8x128xf32>
    %5 = arith.truncf %4 : vector<8x128xf32> to vector<8x128xbf16>
    %c0_3 = arith.constant 0 : index
    %c0_4 = arith.constant 0 : index
    %c0_5 = arith.constant 0 : index
    %6 = vector.load %arg3[%c0_3, %c0_4, %c0_5] : memref<1x128x384xbf16, #tpu.memory_space<vmem>>, vector<1x128x384xbf16>
    %7 = vector.shape_cast %6 : vector<1x128x384xbf16> to vector<128x384xbf16>
    %cst = arith.constant dense<0.000000e+00> : vector<8x384xf32>
    %8 = tpu.matmul %5, %7, %cst {dimension_numbers = #tpu.dot_dimension_numbers<[1], [0], [0], [1], [0, 0, 1, 1], [], []>} : vector<8x128xbf16>, vector<128x384xbf16>, vector<8x384xf32> -> vector<8x384xf32>
    %c0_6 = arith.constant 0 : index
    %c0_7 = arith.constant 0 : index
    %c0_8 = arith.constant 0 : index
    %9 = vector.load %arg4[%c0_6, %c0_7, %c0_8] : memref<1x1x384xf32, #tpu.memory_space<vmem>>, vector<1x1x384xf32>
    %10 = vector.shape_cast %9 : vector<1x1x384xf32> to vector<1x384xf32>
    %11 = vector.broadcast %10 : vector<1x384xf32> to vector<8x384xf32>
    %12 = arith.addf %8, %11 : vector<8x384xf32>
    %13 = vector.extract_strided_slice %12 {offsets = [0, 0], sizes = [8, 128], strides = [1, 1]} : vector<8x384xf32> to vector<8x128xf32>
    %14 = vector.shape_cast %13 : vector<8x128xf32> to vector<1x8x4x32xf32>
    %15 = tpu.transpose %14, [0, 2, 1, 3] : vector<1x8x4x32xf32> -> vector<1x4x8x32xf32>
    %16 = vector.shape_cast %15 : vector<1x4x8x32xf32> to vector<4x8x32xf32>
    %17 = vector.extract_strided_slice %12 {offsets = [0, 128], sizes = [8, 128], strides = [1, 1]} : vector<8x384xf32> to vector<8x128xf32>
    %18 = vector.shape_cast %17 : vector<8x128xf32> to vector<1x8x4x32xf32>
    %19 = tpu.transpose %18, [0, 2, 1, 3] : vector<1x8x4x32xf32> -> vector<1x4x8x32xf32>
    %20 = vector.shape_cast %19 : vector<1x4x8x32xf32> to vector<4x8x32xf32>
    %21 = vector.extract_strided_slice %12 {offsets = [0, 256], sizes = [8, 128], strides = [1, 1]} : vector<8x384xf32> to vector<8x128xf32>
    %22 = vector.shape_cast %21 : vector<8x128xf32> to vector<1x8x4x32xf32>
    %23 = tpu.transpose %22, [0, 2, 1, 3] : vector<1x8x4x32xf32> -> vector<1x4x8x32xf32>
    %24 = vector.shape_cast %23 : vector<1x4x8x32xf32> to vector<4x8x32xf32>
    %25 = arith.truncf %16 : vector<4x8x32xf32> to vector<4x8x32xbf16>
    %26 = arith.truncf %20 : vector<4x8x32xf32> to vector<4x8x32xbf16>
    "tpu.trace_start"() <{level = 10 : i32, message = "bqd,bkd->bqk"}> : () -> ()
    %cst_9 = arith.constant dense<0.000000e+00> : vector<4x8x8xf32>
    %27 = tpu.matmul %25, %26, %cst_9 {dimension_numbers = #tpu.dot_dimension_numbers<[2], [2], [1], [1], [0, 0, 0, 1, 1, 1], [0], [0]>} : vector<4x8x32xbf16>, vector<4x8x32xbf16>, vector<4x8x8xf32> -> vector<4x8x8xf32>
    "tpu.trace_stop"() : () -> ()
    %cst_10 = arith.constant dense<0xFF800000> : vector<4x8xf32>
    %28 = vector.multi_reduction <maximumf>, %27, %cst_10 [2] : vector<4x8x8xf32> to vector<4x8xf32>
    %29 = vector.shape_cast %28 : vector<4x8xf32> to vector<4x8x1xf32>
    %30 = vector.broadcast %29 : vector<4x8x1xf32> to vector<4x8x8xf32>
    %31 = arith.subf %27, %30 : vector<4x8x8xf32>
    %32 = math.exp %31 : vector<4x8x8xf32>
    %cst_11 = arith.constant dense<0.000000e+00> : vector<4x8xf32>
    %33 = vector.multi_reduction <add>, %32, %cst_11 [2] : vector<4x8x8xf32> to vector<4x8xf32>
    %34 = vector.shape_cast %33 : vector<4x8xf32> to vector<4x8x1xf32>
    %35 = tpu.reciprocal %34 {approx = true} : vector<4x8x1xf32> -> vector<4x8x1xf32>
    %36 = vector.broadcast %35 : vector<4x8x1xf32> to vector<4x8x8xf32>
    %37 = arith.mulf %32, %36 : vector<4x8x8xf32>
    %38 = arith.truncf %37 : vector<4x8x8xf32> to vector<4x8x8xbf16>
    %39 = arith.truncf %24 : vector<4x8x32xf32> to vector<4x8x32xbf16>
    "tpu.trace_start"() <{level = 10 : i32, message = "bqk,bkd->bqd"}> : () -> ()
    %cst_12 = arith.constant dense<0.000000e+00> : vector<4x8x32xf32>
    %40 = tpu.matmul %38, %39, %cst_12 {dimension_numbers = #tpu.dot_dimension_numbers<[2], [1], [1], [2], [0, 0, 0, 1, 1, 2], [0], [0]>} : vector<4x8x8xbf16>, vector<4x8x32xbf16>, vector<4x8x32xf32> -> vector<4x8x32xf32>
    "tpu.trace_stop"() : () -> ()
    %41 = vector.shape_cast %40 : vector<4x8x32xf32> to vector<1x4x8x32xf32>
    %42 = tpu.transpose %41, [0, 2, 1, 3] : vector<1x4x8x32xf32> -> vector<1x8x4x32xf32>
    %43 = vector.shape_cast %42 : vector<1x8x4x32xf32> to vector<8x128xf32>
    %44 = arith.truncf %43 : vector<8x128xf32> to vector<8x128xbf16>
    %c0_13 = arith.constant 0 : index
    %c0_14 = arith.constant 0 : index
    %c0_15 = arith.constant 0 : index
    %45 = vector.load %arg5[%c0_13, %c0_14, %c0_15] : memref<1x128x128xbf16, #tpu.memory_space<vmem>>, vector<1x128x128xbf16>
    %46 = vector.shape_cast %45 : vector<1x128x128xbf16> to vector<128x128xbf16>
    %cst_16 = arith.constant dense<0.000000e+00> : vector<8x128xf32>
    %47 = tpu.matmul %44, %46, %cst_16 {dimension_numbers = #tpu.dot_dimension_numbers<[1], [0], [0], [1], [0, 0, 1, 1], [], []>} : vector<8x128xbf16>, vector<128x128xbf16>, vector<8x128xf32> -> vector<8x128xf32>
    %c0_17 = arith.constant 0 : index
    %c0_18 = arith.constant 0 : index
    %c0_19 = arith.constant 0 : index
    %48 = vector.load %arg6[%c0_17, %c0_18, %c0_19] : memref<1x1x128xf32, #tpu.memory_space<vmem>>, vector<1x1x128xf32>
    %49 = vector.shape_cast %48 : vector<1x1x128xf32> to vector<1x128xf32>
    %50 = vector.broadcast %49 : vector<1x128xf32> to vector<8x128xf32>
    %51 = arith.addf %47, %50 : vector<8x128xf32>
    %52 = arith.addf %4, %51 : vector<8x128xf32>
    %c0_20 = arith.constant 0 : index
    %c0_21 = arith.constant 0 : index
    %c0_22 = arith.constant 0 : index
    %53 = vector.load %arg7[%c0_20, %c0_21, %c0_22] : memref<1x1x128xf32, #tpu.memory_space<vmem>>, vector<1x1x128xf32>
    %54 = vector.shape_cast %53 : vector<1x1x128xf32> to vector<1x128xf32>
    %c0_23 = arith.constant 0 : index
    %c0_24 = arith.constant 0 : index
    %c0_25 = arith.constant 0 : index
    %55 = vector.load %arg8[%c0_23, %c0_24, %c0_25] : memref<1x1x128xf32, #tpu.memory_space<vmem>>, vector<1x1x128xf32>
    %56 = vector.shape_cast %55 : vector<1x1x128xf32> to vector<1x128xf32>
    %cst_26 = arith.constant dense<0.000000e+00> : vector<8xf32>
    %57 = vector.multi_reduction <add>, %52, %cst_26 [1] : vector<8x128xf32> to vector<8xf32>
    %58 = vector.shape_cast %57 : vector<8xf32> to vector<8x1xf32>
    %cst_27 = arith.constant 1.280000e+02 : f32
    %59 = vector.broadcast %cst_27 : f32 to vector<8x1xf32>
    %60 = arith.divf %58, %59 : vector<8x1xf32>
    %61 = vector.broadcast %60 : vector<8x1xf32> to vector<8x128xf32>
    %62 = arith.subf %52, %61 : vector<8x128xf32>
    %63 = arith.mulf %62, %62 : vector<8x128xf32>
    %cst_28 = arith.constant dense<0.000000e+00> : vector<8xf32>
    %64 = vector.multi_reduction <add>, %63, %cst_28 [1] : vector<8x128xf32> to vector<8xf32>
    %65 = vector.shape_cast %64 : vector<8xf32> to vector<8x1xf32>
    %cst_29 = arith.constant 1.280000e+02 : f32
    %66 = vector.broadcast %cst_29 : f32 to vector<8x1xf32>
    %67 = arith.divf %65, %66 : vector<8x1xf32>
    %68 = vector.broadcast %60 : vector<8x1xf32> to vector<8x128xf32>
    %69 = arith.subf %52, %68 : vector<8x128xf32>
    %cst_30 = arith.constant 9.99999974E-6 : f32
    %70 = vector.broadcast %cst_30 : f32 to vector<8x1xf32>
    %71 = arith.addf %67, %70 : vector<8x1xf32>
    %72 = math.rsqrt %71 : vector<8x1xf32>
    %73 = vector.broadcast %72 : vector<8x1xf32> to vector<8x128xf32>
    %74 = arith.mulf %69, %73 : vector<8x128xf32>
    %75 = vector.broadcast %54 : vector<1x128xf32> to vector<8x128xf32>
    %76 = arith.mulf %74, %75 : vector<8x128xf32>
    %77 = vector.broadcast %56 : vector<1x128xf32> to vector<8x128xf32>
    %78 = arith.addf %76, %77 : vector<8x128xf32>
    %79 = arith.truncf %78 : vector<8x128xf32> to vector<8x128xbf16>
    %c0_31 = arith.constant 0 : index
    %c0_32 = arith.constant 0 : index
    %c0_33 = arith.constant 0 : index
    %80 = vector.load %arg9[%c0_31, %c0_32, %c0_33] : memref<1x128x256xbf16, #tpu.memory_space<vmem>>, vector<1x128x256xbf16>
    %81 = vector.shape_cast %80 : vector<1x128x256xbf16> to vector<128x256xbf16>
    %cst_34 = arith.constant dense<0.000000e+00> : vector<8x256xf32>
    %82 = tpu.matmul %79, %81, %cst_34 {dimension_numbers = #tpu.dot_dimension_numbers<[1], [0], [0], [1], [0, 0, 1, 1], [], []>} : vector<8x128xbf16>, vector<128x256xbf16>, vector<8x256xf32> -> vector<8x256xf32>
    %c0_35 = arith.constant 0 : index
    %c0_36 = arith.constant 0 : index
    %c0_37 = arith.constant 0 : index
    %83 = vector.load %arg10[%c0_35, %c0_36, %c0_37] : memref<1x1x256xf32, #tpu.memory_space<vmem>>, vector<1x1x256xf32>
    %84 = vector.shape_cast %83 : vector<1x1x256xf32> to vector<1x256xf32>
    %85 = vector.broadcast %84 : vector<1x256xf32> to vector<8x256xf32>
    %86 = arith.addf %82, %85 : vector<8x256xf32>
    %cst_38 = arith.constant 0.000000e+00 : f32
    %87 = vector.broadcast %cst_38 : f32 to vector<8x256xf32>
    %88 = arith.maximumf %86, %87 : vector<8x256xf32>
    %89 = arith.truncf %88 : vector<8x256xf32> to vector<8x256xbf16>
    %c0_39 = arith.constant 0 : index
    %c0_40 = arith.constant 0 : index
    %c0_41 = arith.constant 0 : index
    %90 = vector.load %arg11[%c0_39, %c0_40, %c0_41] : memref<1x256x128xbf16, #tpu.memory_space<vmem>>, vector<1x256x128xbf16>
    %91 = vector.shape_cast %90 : vector<1x256x128xbf16> to vector<256x128xbf16>
    %cst_42 = arith.constant dense<0.000000e+00> : vector<8x128xf32>
    %92 = tpu.matmul %89, %91, %cst_42 {dimension_numbers = #tpu.dot_dimension_numbers<[1], [0], [0], [1], [0, 0, 1, 1], [], []>} : vector<8x256xbf16>, vector<256x128xbf16>, vector<8x128xf32> -> vector<8x128xf32>
    %c0_43 = arith.constant 0 : index
    %c0_44 = arith.constant 0 : index
    %c0_45 = arith.constant 0 : index
    %93 = vector.load %arg12[%c0_43, %c0_44, %c0_45] : memref<1x1x128xf32, #tpu.memory_space<vmem>>, vector<1x1x128xf32>
    %94 = vector.shape_cast %93 : vector<1x1x128xf32> to vector<1x128xf32>
    %95 = vector.broadcast %94 : vector<1x128xf32> to vector<8x128xf32>
    %96 = arith.addf %92, %95 : vector<8x128xf32>
    %97 = arith.addf %78, %96 : vector<8x128xf32>
    %c0_46 = arith.constant 0 : index
    %c0_47 = arith.constant 0 : index
    %c0_48 = arith.constant 0 : index
    %98 = vector.load %arg13[%c0_46, %c0_47, %c0_48] : memref<1x1x128xf32, #tpu.memory_space<vmem>>, vector<1x1x128xf32>
    %99 = vector.shape_cast %98 : vector<1x1x128xf32> to vector<1x128xf32>
    %c0_49 = arith.constant 0 : index
    %c0_50 = arith.constant 0 : index
    %c0_51 = arith.constant 0 : index
    %100 = vector.load %arg14[%c0_49, %c0_50, %c0_51] : memref<1x1x128xf32, #tpu.memory_space<vmem>>, vector<1x1x128xf32>
    %101 = vector.shape_cast %100 : vector<1x1x128xf32> to vector<1x128xf32>
    %cst_52 = arith.constant dense<0.000000e+00> : vector<8xf32>
    %102 = vector.multi_reduction <add>, %97, %cst_52 [1] : vector<8x128xf32> to vector<8xf32>
    %103 = vector.shape_cast %102 : vector<8xf32> to vector<8x1xf32>
    %cst_53 = arith.constant 1.280000e+02 : f32
    %104 = vector.broadcast %cst_53 : f32 to vector<8x1xf32>
    %105 = arith.divf %103, %104 : vector<8x1xf32>
    %106 = vector.broadcast %105 : vector<8x1xf32> to vector<8x128xf32>
    %107 = arith.subf %97, %106 : vector<8x128xf32>
    %108 = arith.mulf %107, %107 : vector<8x128xf32>
    %cst_54 = arith.constant dense<0.000000e+00> : vector<8xf32>
    %109 = vector.multi_reduction <add>, %108, %cst_54 [1] : vector<8x128xf32> to vector<8xf32>
    %110 = vector.shape_cast %109 : vector<8xf32> to vector<8x1xf32>
    %cst_55 = arith.constant 1.280000e+02 : f32
    %111 = vector.broadcast %cst_55 : f32 to vector<8x1xf32>
    %112 = arith.divf %110, %111 : vector<8x1xf32>
    %113 = vector.broadcast %105 : vector<8x1xf32> to vector<8x128xf32>
    %114 = arith.subf %97, %113 : vector<8x128xf32>
    %cst_56 = arith.constant 9.99999974E-6 : f32
    %115 = vector.broadcast %cst_56 : f32 to vector<8x1xf32>
    %116 = arith.addf %112, %115 : vector<8x1xf32>
    %117 = math.rsqrt %116 : vector<8x1xf32>
    %118 = vector.broadcast %117 : vector<8x1xf32> to vector<8x128xf32>
    %119 = arith.mulf %114, %118 : vector<8x128xf32>
    %120 = vector.broadcast %99 : vector<1x128xf32> to vector<8x128xf32>
    %121 = arith.mulf %119, %120 : vector<8x128xf32>
    %122 = vector.broadcast %101 : vector<1x128xf32> to vector<8x128xf32>
    %123 = arith.addf %121, %122 : vector<8x128xf32>
    %124 = vector.shape_cast %123 : vector<8x128xf32> to vector<1x8x128xf32>
    %c0_57 = arith.constant 0 : index
    %c0_58 = arith.constant 0 : index
    %c0_59 = arith.constant 0 : index
    %125 = vector.load %arg15[%c0_57, %c0_58, %c0_59] : memref<1x8x128xf32, #tpu.memory_space<vmem>>, vector<1x8x128xf32>
    tpu.vector_store %arg15[%c0_57, %c0_58, %c0_59], %124 {strides = array<i32>} : memref<1x8x128xf32, #tpu.memory_space<vmem>>, vector<1x8x128xf32>,
    return
  }
  func.func @transform_0(%arg0: i32, %arg1: i32) -> (i32, i32, i32) {
    %c0_i32 = arith.constant 0 : i32
    %c0_i32_0 = arith.constant 0 : i32
    %c0_i32_1 = arith.constant 0 : i32
    return %arg0, %c0_i32, %c0_i32_0 : i32, i32, i32
  }
  func.func @transform_1(%arg0: i32, %arg1: i32) -> (i32, i32, i32) {
    %c0_i32 = arith.constant 0 : i32
    %c0_i32_0 = arith.constant 0 : i32
    %c0_i32_1 = arith.constant 0 : i32
    return %arg1, %c0_i32, %c0_i32_0 : i32, i32, i32
  }
  func.func @transform_2(%arg0: i32, %arg1: i32) -> (i32, i32, i32) {
    %c0_i32 = arith.constant 0 : i32
    %c0_i32_0 = arith.constant 0 : i32
    %c0_i32_1 = arith.constant 0 : i32
    return %arg1, %c0_i32, %c0_i32_0 : i32, i32, i32
  }
  func.func @transform_3(%arg0: i32, %arg1: i32) -> (i32, i32, i32) {
    %c0_i32 = arith.constant 0 : i32
    %c0_i32_0 = arith.constant 0 : i32
    %c0_i32_1 = arith.constant 0 : i32
    return %arg1, %c0_i32, %c0_i32_0 : i32, i32, i32
  }
  func.func @transform_4(%arg0: i32, %arg1: i32) -> (i32, i32, i32) {
    %c0_i32 = arith.constant 0 : i32
    %c0_i32_0 = arith.constant 0 : i32
    %c0_i32_1 = arith.constant 0 : i32
    return %arg1, %c0_i32, %c0_i32_0 : i32, i32, i32
  }
  func.func @transform_5(%arg0: i32, %arg1: i32) -> (i32, i32, i32) {
    %c0_i32 = arith.constant 0 : i32
    %c0_i32_0 = arith.constant 0 : i32
    %c0_i32_1 = arith.constant 0 : i32
    return %arg1, %c0_i32, %c0_i32_0 : i32, i32, i32
  }
  func.func @transform_6(%arg0: i32, %arg1: i32) -> (i32, i32, i32) {
    %c0_i32 = arith.constant 0 : i32
    %c0_i32_0 = arith.constant 0 : i32
    %c0_i32_1 = arith.constant 0 : i32
    return %arg1, %c0_i32, %c0_i32_0 : i32, i32, i32
  }
  func.func @transform_7(%arg0: i32, %arg1: i32) -> (i32, i32, i32) {
    %c0_i32 = arith.constant 0 : i32
    %c0_i32_0 = arith.constant 0 : i32
    %c0_i32_1 = arith.constant 0 : i32
    return %arg1, %c0_i32, %c0_i32_0 : i32, i32, i32
  }
  func.func @transform_8(%arg0: i32, %arg1: i32) -> (i32, i32, i32) {
    %c0_i32 = arith.constant 0 : i32
    %c0_i32_0 = arith.constant 0 : i32
    %c0_i32_1 = arith.constant 0 : i32
    return %arg1, %c0_i32, %c0_i32_0 : i32, i32, i32
  }
  func.func @transform_9(%arg0: i32, %arg1: i32) -> (i32, i32, i32) {
    %c0_i32 = arith.constant 0 : i32
    %c0_i32_0 = arith.constant 0 : i32
    %c0_i32_1 = arith.constant 0 : i32
    return %arg1, %c0_i32, %c0_i32_0 : i32, i32, i32
  }
  func.func @transform_10(%arg0: i32, %arg1: i32) -> (i32, i32, i32) {
    %c0_i32 = arith.constant 0 : i32
    %c0_i32_0 = arith.constant 0 : i32
    %c0_i32_1 = arith.constant 0 : i32
    return %arg1, %c0_i32, %c0_i32_0 : i32, i32, i32
  }
  func.func @transform_11(%arg0: i32, %arg1: i32) -> (i32, i32, i32) {
    %c0_i32 = arith.constant 0 : i32
    %c0_i32_0 = arith.constant 0 : i32
    %c0_i32_1 = arith.constant 0 : i32
    return %arg1, %c0_i32, %c0_i32_0 : i32, i32, i32
  }
  func.func @transform_12(%arg0: i32, %arg1: i32) -> (i32, i32, i32) {
    %c0_i32 = arith.constant 0 : i32
    %c0_i32_0 = arith.constant 0 : i32
    %c0_i32_1 = arith.constant 0 : i32
    return %arg1, %c0_i32, %c0_i32_0 : i32, i32, i32
  }
  func.func @transform_13(%arg0: i32, %arg1: i32) -> (i32, i32, i32) {
    %c0_i32 = arith.constant 0 : i32
    %c0_i32_0 = arith.constant 0 : i32
    %c0_i32_1 = arith.constant 0 : i32
    return %arg0, %c0_i32, %c0_i32_0 : i32, i32, i32
  }
}

</mosaic_0001>

<llo_original>
// kernel: tpu_custom_call.1
$region0: #{tpu_custom_call.1}
  #allocation0 [shape = 'u32[]', space=smem, size = 0x4, offset = 0x4, fixed_abs, tag = 'smem constant byte address 0x4 - core index']
  #allocation1 [shape = 'u32[144,128]{1,0:T(1,128)}', space=vmem, size = 0x12000, scoped, tag = 'internal scratch']
  %s0 = inlined_call_operand.hbm [shape: f32[2,8,128], index: 0, kind: input, shape index: {}]
  %s1 = inlined_call_operand.hbm [shape: bf16[2,128,384], index: 1, kind: input, shape index: {}]
  %s2 = inlined_call_operand.vmem [shape: f32[2,1,384], index: 2, kind: input, shape index: {}]
  %s3 = inlined_call_operand.hbm [shape: bf16[2,128,128], index: 3, kind: input, shape index: {}]
  %s4 = inlined_call_operand.vmem [shape: f32[2,1,128], index: 4, kind: input, shape index: {}]
  %s5 = inlined_call_operand.vmem [shape: f32[2,1,128], index: 5, kind: input, shape index: {}]
  %s6 = inlined_call_operand.vmem [shape: f32[2,1,128], index: 6, kind: input, shape index: {}]
  %s7 = inlined_call_operand.hbm [shape: bf16[2,128,256], index: 7, kind: input, shape index: {}]
  %s8 = inlined_call_operand.vmem [shape: f32[2,1,256], index: 8, kind: input, shape index: {}]
  %s9 = inlined_call_operand.hbm [shape: bf16[2,256,128], index: 9, kind: input, shape index: {}]
  %s10 = inlined_call_operand.vmem [shape: f32[2,1,128], index: 10, kind: input, shape index: {}]
  %s11 = inlined_call_operand.vmem [shape: f32[2,1,128], index: 11, kind: input, shape index: {}]
  %s12 = inlined_call_operand.vmem [shape: f32[2,1,128], index: 12, kind: input, shape index: {}]
  %s13 = inlined_call_operand.hbm [shape: f32[2,8,128], index: 13, kind: output, shape index: {}]
  %s14 = sld [smem:[#allocation0]]
  $region109: #{tpu_custom_call.1} parent=0
    _
  %s16 = ssub.s32 1, %s14
  %s17 = scalar_select 0, %s16, %s14
  $region1: #{tpu_custom_call.1} parent=0
    #allocation2 [shape = 'u8[8192]{0}', space=vmem, size = 0x2000, scoped, tag = 'input window, operand 0']
    #allocation3 [shape = 's32[2]{0}', space=sflag, size = 0x8, scoped, tag = 'scoped memory for tpu_custom_call.1']
    #allocation4 [shape = 's32[2]{0}', space=sflag, size = 0x8, scoped, tag = 'scoped memory for tpu_custom_call.1']
    #allocation5 [shape = 'u8[196608]{0}', space=vmem, size = 0x30000, scoped, tag = 'input window, operand 1']
    #allocation6 [shape = 's32[2]{0}', space=sflag, size = 0x8, scoped, tag = 'scoped memory for tpu_custom_call.1']
    #allocation7 [shape = 'u8[65536]{0}', space=vmem, size = 0x10000, scoped, tag = 'input window, operand 3']
    #allocation8 [shape = 'u8[131072]{0}', space=vmem, size = 0x20000, scoped, tag = 'input window, operand 7']
    #allocation9 [shape = 's32[2]{0}', space=sflag, size = 0x8, scoped, tag = 'scoped memory for tpu_custom_call.1']
    #allocation10 [shape = 'u8[131072]{0}', space=vmem, size = 0x20000, scoped, tag = 'input window, operand 9']
    #allocation11 [shape = 'u8[8192]{0}', space=vmem, size = 0x2000, scoped, tag = 'output window, operand 0']
    %18 = vsyncpa [#allocation3], 0
    %s19 = scalar_lea.sflag [#allocation3], 1
    %20 = vsyncpa %s19, 0
    %21 = vsyncpa [#allocation6], 0
    %s22 = scalar_lea.sflag [#allocation6], 1
    %23 = vsyncpa %s22, 0
    %24 = vsyncpa [#allocation9], 0
    %s25 = scalar_lea.sflag [#allocation9], 1
    %26 = vsyncpa %s25, 0
    %27 = vsyncpa [#allocation4], 0
    %s28 = scalar_lea.sflag [#allocation4], 1
    %29 = vsyncpa %s28, 0
    loop: start=0, step=1, limit=6
    $region2: #{tpu_custom_call.1} parent=1 // loop_pre_header
      _
    $region3: #{tpu_custom_call.1} parent=1 // loop_header
      %s31 = sphi 0, %s35
      %p32 = scmp.ge.s32.totalorder %s31, 6
      %s38 = sphi 0, %s50
      %s39 = sphi 0, %s46
      %s40 = sphi 0, %s38
      %s41 = sphi 0, %s39
      %s42 = sphi 0, %s40
      %s43 = sphi 0, %s41
      %s53 = sphi 0, %s55
      %s56 = sphi 0, %s53
      %s57 = sphi 0, %s56
      %s73 = sphi 0, %s57
      %s79 = sphi 0, %s81
      %s82 = sphi 0, %s79
      %s83 = sphi 0, %s82
      %s99 = sphi 0, %s83
      %s105 = sphi 0, %s107
      %s108 = sphi 0, %s105
      %s109 = sphi 0, %s108
      %s125 = sphi 0, %s109
      %s131 = sphi 0, %s133
      %s134 = sphi 0, %s131
      %s135 = sphi 0, %s134
      %s151 = sphi 0, %s135
      %s157 = sphi 0, %s159
      %s160 = sphi 0, %s157
      %s161 = sphi 0, %s160
      %s177 = sphi 0, %s161
      %s183 = sphi 0, %s185
      %s186 = sphi 0, %s183
      %s187 = sphi 0, %s186
      %s203 = sphi 0, %s187
      %s209 = sphi 0, %s211
      %s212 = sphi 0, %s209
      %s213 = sphi 0, %s212
      %s229 = sphi 0, %s213
      %s235 = sphi 0, %s237
      %s238 = sphi 0, %s235
      %s239 = sphi 0, %s238
      %s255 = sphi 0, %s239
      %s261 = sphi 0, %s263
      %s264 = sphi 0, %s261
      %s265 = sphi 0, %s264
      %s281 = sphi 0, %s265
      %s287 = sphi 0, %s289
      %s290 = sphi 0, %s287
      %s291 = sphi 0, %s290
      %s307 = sphi 0, %s291
      %s313 = sphi 0, %s315
      %s316 = sphi 0, %s313
      %s317 = sphi 0, %s316
      %s333 = sphi 0, %s317
      %s339 = sphi 0, %s341
      %s342 = sphi 0, %s339
      %s343 = sphi 0, %s342
      %s359 = sphi 0, %s343
      %s365 = sphi 0, %s367
      %s368 = sphi 0, %s365
      %s369 = sphi 0, %s368
      %s385 = sphi 0, %s369
      %s391 = sphi 0, %s393
      %s394 = sphi 0, %s391
      %s395 = sphi 0, %s394
      %s411 = sphi 0, %s395
    $region4: #{tpu_custom_call.1} parent=1 // loop_header_branch
      %34 = sbr.rel (%p32) target = $region8
    $region5: #{tpu_custom_call.1} parent=1 // loop_body
      %s36 = ssub.s32 %s31, 1
      %s37 = ssub.s32 %s31, 2
      %s44 = sadd.s32 1, %s39
      %p45 = scmp.ge.s32.totalorder %s44, 2
      %s46 = scalar_select %p45, 0, %s44
      %s47 = sadd.s32 1, %s38
      %s48 = scalar_select %p45, %s47, %s38
      %p49 = scmp.ge.s32.totalorder %s48, 2
      %s50 = scalar_select %p49, 0, %s48
      %s51 = ssub.s32 %s38, %s50
      %p52 = scmp.eq.s32.totalorder %s51, 0
      %s54 = sadd.s32 %s53, 1
      %s55 = scalar_select %p52, %s53, %s54
      %p58 = pneg %p52
      %p59 = scmp.eq.s32.totalorder %s31, 3
      %p60 = por %p58, %p59
      %p61 = scmp.ne.s32.totalorder %s53, %s56
      %p62 = scmp.eq.s32.totalorder %s31, 0
      %p63 = por %p61, %p62
      %p64 = scmp.ne.s32.totalorder %s53, %s56
      %p65 = scmp.eq.s32.totalorder %s36, 3
      %p66 = por %p64, %p65
      %p67 = scmp.ne.s32.totalorder %s56, %s57
      %p68 = scmp.eq.s32.totalorder %s36, 0
      %p69 = por %p67, %p68
      %p70 = scmp.ne.s32.totalorder %s56, %s57
      %p71 = scmp.eq.s32.totalorder %s37, 3
      %p72 = por %p70, %p71
      %p74 = scmp.ne.s32.totalorder %s57, %s73
      %p75 = scmp.eq.s32.totalorder %s37, 0
      %p76 = por %p74, %p75
      %s77 = ssub.s32 %s39, %s46
      %p78 = scmp.eq.s32.totalorder %s77, 0
      %s80 = sadd.s32 %s79, 1
      %s81 = scalar_select %p78, %s79, %s80
      %p84 = pneg %p78
      %p85 = scmp.eq.s32.totalorder %s31, 3
      %p86 = por %p84, %p85
      %p87 = scmp.ne.s32.totalorder %s79, %s82
      %p88 = scmp.eq.s32.totalorder %s31, 0
      %p89 = por %p87, %p88
      %p90 = scmp.ne.s32.totalorder %s79, %s82
      %p91 = scmp.eq.s32.totalorder %s36, 3
      %p92 = por %p90, %p91
      %p93 = scmp.ne.s32.totalorder %s82, %s83
      %p94 = scmp.eq.s32.totalorder %s36, 0
      %p95 = por %p93, %p94
      %p96 = scmp.ne.s32.totalorder %s82, %s83
      %p97 = scmp.eq.s32.totalorder %s37, 3
      %p98 = por %p96, %p97
      %p100 = scmp.ne.s32.totalorder %s83, %s99
      %p101 = scmp.eq.s32.totalorder %s37, 0
      %p102 = por %p100, %p101
      %s103 = ssub.s32 %s39, %s46
      %p104 = scmp.eq.s32.totalorder %s103, 0
      %s106 = sadd.s32 %s105, 1
      %s107 = scalar_select %p104, %s105, %s106
      %p110 = pneg %p104
      %p111 = scmp.eq.s32.totalorder %s31, 3
      %p112 = por %p110, %p111
      %p113 = scmp.ne.s32.totalorder %s105, %s108
      %p114 = scmp.eq.s32.totalorder %s31, 0
      %p115 = por %p113, %p114
      %p116 = scmp.ne.s32.totalorder %s105, %s108
      %p117 = scmp.eq.s32.totalorder %s36, 3
      %p118 = por %p116, %p117
      %p119 = scmp.ne.s32.totalorder %s108, %s109
      %p120 = scmp.eq.s32.totalorder %s36, 0
      %p121 = por %p119, %p120
      %p122 = scmp.ne.s32.totalorder %s108, %s109
      %p123 = scmp.eq.s32.totalorder %s37, 3
      %p124 = por %p122, %p123
      %p126 = scmp.ne.s32.totalorder %s109, %s125
      %p127 = scmp.eq.s32.totalorder %s37, 0
      %p128 = por %p126, %p127
      %s129 = ssub.s32 %s39, %s46
      %p130 = scmp.eq.s32.totalorder %s129, 0
      %s132 = sadd.s32 %s131, 1
      %s133 = scalar_select %p130, %s131, %s132
      %p136 = pneg %p130
      %p137 = scmp.eq.s32.totalorder %s31, 3
      %p138 = por %p136, %p137
      %p139 = scmp.ne.s32.totalorder %s131, %s134
      %p140 = scmp.eq.s32.totalorder %s31, 0
      %p141 = por %p139, %p140
      %p142 = scmp.ne.s32.totalorder %s131, %s134
      %p143 = scmp.eq.s32.totalorder %s36, 3
      %p144 = por %p142, %p143
      %p145 = scmp.ne.s32.totalorder %s134, %s135
      %p146 = scmp.eq.s32.totalorder %s36, 0
      %p147 = por %p145, %p146
      %p148 = scmp.ne.s32.totalorder %s134, %s135
      %p149 = scmp.eq.s32.totalorder %s37, 3
      %p150 = por %p148, %p149
      %p152 = scmp.ne.s32.totalorder %s135, %s151
      %p153 = scmp.eq.s32.totalorder %s37, 0
      %p154 = por %p152, %p153
      %s155 = ssub.s32 %s39, %s46
      %p156 = scmp.eq.s32.totalorder %s155, 0
      %s158 = sadd.s32 %s157, 1
      %s159 = scalar_select %p156, %s157, %s158
      %p162 = pneg %p156
      %p163 = scmp.eq.s32.totalorder %s31, 3
      %p164 = por %p162, %p163
      %p165 = scmp.ne.s32.totalorder %s157, %s160
      %p166 = scmp.eq.s32.totalorder %s31, 0
      %p167 = por %p165, %p166
      %p168 = scmp.ne.s32.totalorder %s157, %s160
      %p169 = scmp.eq.s32.totalorder %s36, 3
      %p170 = por %p168, %p169
      %p171 = scmp.ne.s32.totalorder %s160, %s161
      %p172 = scmp.eq.s32.totalorder %s36, 0
      %p173 = por %p171, %p172
      %p174 = scmp.ne.s32.totalorder %s160, %s161
      %p175 = scmp.eq.s32.totalorder %s37, 3
      %p176 = por %p174, %p175
      %p178 = scmp.ne.s32.totalorder %s161, %s177
      %p179 = scmp.eq.s32.totalorder %s37, 0
      %p180 = por %p178, %p179
      %s181 = ssub.s32 %s39, %s46
      %p182 = scmp.eq.s32.totalorder %s181, 0
      %s184 = sadd.s32 %s183, 1
      %s185 = scalar_select %p182, %s183, %s184
      %p188 = pneg %p182
      %p189 = scmp.eq.s32.totalorder %s31, 3
      %p190 = por %p188, %p189
      %p191 = scmp.ne.s32.totalorder %s183, %s186
      %p192 = scmp.eq.s32.totalorder %s31, 0
      %p193 = por %p191, %p192
      %p194 = scmp.ne.s32.totalorder %s183, %s186
      %p195 = scmp.eq.s32.totalorder %s36, 3
      %p196 = por %p194, %p195
      %p197 = scmp.ne.s32.totalorder %s186, %s187
      %p198 = scmp.eq.s32.totalorder %s36, 0
      %p199 = por %p197, %p198
      %p200 = scmp.ne.s32.totalorder %s186, %s187
      %p201 = scmp.eq.s32.totalorder %s37, 3
      %p202 = por %p200, %p201
      %p204 = scmp.ne.s32.totalorder %s187, %s203
      %p205 = scmp.eq.s32.totalorder %s37, 0
      %p206 = por %p204, %p205
      %s207 = ssub.s32 %s39, %s46
      %p208 = scmp.eq.s32.totalorder %s207, 0
      %s210 = sadd.s32 %s209, 1
      %s211 = scalar_select %p208, %s209, %s210
      %p214 = pneg %p208
      %p215 = scmp.eq.s32.totalorder %s31, 3
      %p216 = por %p214, %p215
      %p217 = scmp.ne.s32.totalorder %s209, %s212
      %p218 = scmp.eq.s32.totalorder %s31, 0
      %p219 = por %p217, %p218
      %p220 = scmp.ne.s32.totalorder %s209, %s212
      %p221 = scmp.eq.s32.totalorder %s36, 3
      %p222 = por %p220, %p221
      %p223 = scmp.ne.s32.totalorder %s212, %s213
      %p224 = scmp.eq.s32.totalorder %s36, 0
      %p225 = por %p223, %p224
      %p226 = scmp.ne.s32.totalorder %s212, %s213
      %p227 = scmp.eq.s32.totalorder %s37, 3
      %p228 = por %p226, %p227
      %p230 = scmp.ne.s32.totalorder %s213, %s229
      %p231 = scmp.eq.s32.totalorder %s37, 0
      %p232 = por %p230, %p231
      %s233 = ssub.s32 %s39, %s46
      %p234 = scmp.eq.s32.totalorder %s233, 0
      %s236 = sadd.s32 %s235, 1
      %s237 = scalar_select %p234, %s235, %s236
      %p240 = pneg %p234
      %p241 = scmp.eq.s32.totalorder %s31, 3
      %p242 = por %p240, %p241
      %p243 = scmp.ne.s32.totalorder %s235, %s238
      %p244 = scmp.eq.s32.totalorder %s31, 0
      %p245 = por %p243, %p244
      %p246 = scmp.ne.s32.totalorder %s235, %s238
      %p247 = scmp.eq.s32.totalorder %s36, 3
      %p248 = por %p246, %p247
      %p249 = scmp.ne.s32.totalorder %s238, %s239
      %p250 = scmp.eq.s32.totalorder %s36, 0
      %p251 = por %p249, %p250
      %p252 = scmp.ne.s32.totalorder %s238, %s239
      %p253 = scmp.eq.s32.totalorder %s37, 3
      %p254 = por %p252, %p253
      %p256 = scmp.ne.s32.totalorder %s239, %s255
      %p257 = scmp.eq.s32.totalorder %s37, 0
      %p258 = por %p256, %p257
      %s259 = ssub.s32 %s39, %s46
      %p260 = scmp.eq.s32.totalorder %s259, 0
      %s262 = sadd.s32 %s261, 1
      %s263 = scalar_select %p260, %s261, %s262
      %p266 = pneg %p260
      %p267 = scmp.eq.s32.totalorder %s31, 3
      %p268 = por %p266, %p267
      %p269 = scmp.ne.s32.totalorder %s261, %s264
      %p270 = scmp.eq.s32.totalorder %s31, 0
      %p271 = por %p269, %p270
      %p272 = scmp.ne.s32.totalorder %s261, %s264
      %p273 = scmp.eq.s32.totalorder %s36, 3
      %p274 = por %p272, %p273
      %p275 = scmp.ne.s32.totalorder %s264, %s265
      %p276 = scmp.eq.s32.totalorder %s36, 0
      %p277 = por %p275, %p276
      %p278 = scmp.ne.s32.totalorder %s264, %s265
      %p279 = scmp.eq.s32.totalorder %s37, 3
      %p280 = por %p278, %p279
      %p282 = scmp.ne.s32.totalorder %s265, %s281
      %p283 = scmp.eq.s32.totalorder %s37, 0
      %p284 = por %p282, %p283
      %s285 = ssub.s32 %s39, %s46
      %p286 = scmp.eq.s32.totalorder %s285, 0
      %s288 = sadd.s32 %s287, 1
      %s289 = scalar_select %p286, %s287, %s288
      %p292 = pneg %p286
      %p293 = scmp.eq.s32.totalorder %s31, 3
      %p294 = por %p292, %p293
      %p295 = scmp.ne.s32.totalorder %s287, %s290
      %p296 = scmp.eq.s32.totalorder %s31, 0
      %p297 = por %p295, %p296
      %p298 = scmp.ne.s32.totalorder %s287, %s290
      %p299 = scmp.eq.s32.totalorder %s36, 3
      %p300 = por %p298, %p299
      %p301 = scmp.ne.s32.totalorder %s290, %s291
      %p302 = scmp.eq.s32.totalorder %s36, 0
      %p303 = por %p301, %p302
      %p304 = scmp.ne.s32.totalorder %s290, %s291
      %p305 = scmp.eq.s32.totalorder %s37, 3
      %p306 = por %p304, %p305
      %p308 = scmp.ne.s32.totalorder %s291, %s307
      %p309 = scmp.eq.s32.totalorder %s37, 0
      %p310 = por %p308, %p309
      %s311 = ssub.s32 %s39, %s46
      %p312 = scmp.eq.s32.totalorder %s311, 0
      %s314 = sadd.s32 %s313, 1
      %s315 = scalar_select %p312, %s313, %s314
      %p318 = pneg %p312
      %p319 = scmp.eq.s32.totalorder %s31, 3
      %p320 = por %p318, %p319
      %p321 = scmp.ne.s32.totalorder %s313, %s316
      %p322 = scmp.eq.s32.totalorder %s31, 0
      %p323 = por %p321, %p322
      %p324 = scmp.ne.s32.totalorder %s313, %s316
      %p325 = scmp.eq.s32.totalorder %s36, 3
      %p326 = por %p324, %p325
      %p327 = scmp.ne.s32.totalorder %s316, %s317
      %p328 = scmp.eq.s32.totalorder %s36, 0
      %p329 = por %p327, %p328
      %p330 = scmp.ne.s32.totalorder %s316, %s317
      %p331 = scmp.eq.s32.totalorder %s37, 3
      %p332 = por %p330, %p331
      %p334 = scmp.ne.s32.totalorder %s317, %s333
      %p335 = scmp.eq.s32.totalorder %s37, 0
      %p336 = por %p334, %p335
      %s337 = ssub.s32 %s39, %s46
      %p338 = scmp.eq.s32.totalorder %s337, 0
      %s340 = sadd.s32 %s339, 1
      %s341 = scalar_select %p338, %s339, %s340
      %p344 = pneg %p338
      %p345 = scmp.eq.s32.totalorder %s31, 3
      %p346 = por %p344, %p345
      %p347 = scmp.ne.s32.totalorder %s339, %s342
      %p348 = scmp.eq.s32.totalorder %s31, 0
      %p349 = por %p347, %p348
      %p350 = scmp.ne.s32.totalorder %s339, %s342
      %p351 = scmp.eq.s32.totalorder %s36, 3
      %p352 = por %p350, %p351
      %p353 = scmp.ne.s32.totalorder %s342, %s343
      %p354 = scmp.eq.s32.totalorder %s36, 0
      %p355 = por %p353, %p354
      %p356 = scmp.ne.s32.totalorder %s342, %s343
      %p357 = scmp.eq.s32.totalorder %s37, 3
      %p358 = por %p356, %p357
      %p360 = scmp.ne.s32.totalorder %s343, %s359
      %p361 = scmp.eq.s32.totalorder %s37, 0
      %p362 = por %p360, %p361
      %s363 = ssub.s32 %s39, %s46
      %p364 = scmp.eq.s32.totalorder %s363, 0
      %s366 = sadd.s32 %s365, 1
      %s367 = scalar_select %p364, %s365, %s366
      %p370 = pneg %p364
      %p371 = scmp.eq.s32.totalorder %s31, 3
      %p372 = por %p370, %p371
      %p373 = scmp.ne.s32.totalorder %s365, %s368
      %p374 = scmp.eq.s32.totalorder %s31, 0
      %p375 = por %p373, %p374
      %p376 = scmp.ne.s32.totalorder %s365, %s368
      %p377 = scmp.eq.s32.totalorder %s36, 3
      %p378 = por %p376, %p377
      %p379 = scmp.ne.s32.totalorder %s368, %s369
      %p380 = scmp.eq.s32.totalorder %s36, 0
      %p381 = por %p379, %p380
      %p382 = scmp.ne.s32.totalorder %s368, %s369
      %p383 = scmp.eq.s32.totalorder %s37, 3
      %p384 = por %p382, %p383
      %p386 = scmp.ne.s32.totalorder %s369, %s385
      %p387 = scmp.eq.s32.totalorder %s37, 0
      %p388 = por %p386, %p387
      %s389 = ssub.s32 %s38, %s50
      %p390 = scmp.eq.s32.totalorder %s389, 0
      %s392 = sadd.s32 %s391, 1
      %s393 = scalar_select %p390, %s391, %s392
      %p396 = pneg %p390
      %p397 = scmp.eq.s32.totalorder %s31, 3
      %p398 = por %p396, %p397
      %p399 = scmp.ne.s32.totalorder %s391, %s394
      %p400 = scmp.eq.s32.totalorder %s31, 0
      %p401 = por %p399, %p400
      %p402 = scmp.ne.s32.totalorder %s391, %s394
      %p403 = scmp.eq.s32.totalorder %s36, 3
      %p404 = por %p402, %p403
      %p405 = scmp.ne.s32.totalorder %s394, %s395
      %p406 = scmp.eq.s32.totalorder %s36, 0
      %p407 = por %p405, %p406
      %p408 = scmp.ne.s32.totalorder %s394, %s395
      %p409 = scmp.eq.s32.totalorder %s37, 3
      %p410 = por %p408, %p409
      %p412 = scmp.ne.s32.totalorder %s395, %s411
      %p413 = scmp.eq.s32.totalorder %s37, 0
      %p414 = por %p412, %p413
      %p415 = scmp.le.s32.totalorder 1, %s31
      %p416 = scmp.lt.s32.totalorder %s31, 5
      %p417 = pnand %p415, %p416
      %p418 = pneg %p417
      // Predicated region
      $region9: #{tpu_custom_call.1} parent=5 // pred_check
        _
      $region10: #{tpu_custom_call.1} parent=5 // pred_check_branch
        %420 = sbr.rel (%p417) target = $region12
      $region11: #{tpu_custom_call.1} parent=5 // pred_region
        %s421 = ssub.s32 %s31, 1
      $region12: #{tpu_custom_call.1} parent=5 // pred_fallthru
        _
      %p422 = scmp.lt.s32.totalorder %s31, 4
      // Predicated region
      $region13: #{tpu_custom_call.1} parent=5 // pred_check
        %p423 = pneg %p422
      $region14: #{tpu_custom_call.1} parent=5 // pred_check_branch
        %425 = sbr.rel (%p423) target = $region16
      $region15: #{tpu_custom_call.1} parent=5 // pred_region
        // Predicated region
        $region17: #{tpu_custom_call.1} parent=15 // pred_check
          %p426 = pneg %p63
        $region18: #{tpu_custom_call.1} parent=15 // pred_check_branch
          %428 = sbr.rel (%p426) target = $region20
        $region19: #{tpu_custom_call.1} parent=15 // pred_region
          %s429 = sand.u32 %s53, 1
          %s430 = scalar_lea.sflag [#allocation3], %s429
          %s431 = sand.u32 %s53, 1
          %s432 = smul.addr %s431, 8
          %s433 = scalar_lea.vmem [#allocation2], %s432
          %s435 = ssub.s32 128, 128
          %436 = vsyncadd %s430, %s435
          %s437 = smul.addr %s38, 128
          %s438 = scalar_lea.hbm %s0, %s437
          %s440 = sshll.u32 %s433, 4
          %s441 = int_to_ptr.vmem [resolvable:$true] %s440
          %443 = dma.hbm_to_vmem [thread:$0]  %s438, 128, %s441, %s430
        $region20: #{tpu_custom_call.1} parent=15 // pred_fallthru
          _
        // Predicated region
        $region21: #{tpu_custom_call.1} parent=15 // pred_check
          %p444 = pneg %p89
        $region22: #{tpu_custom_call.1} parent=15 // pred_check_branch
          %446 = sbr.rel (%p444) target = $region24
        $region23: #{tpu_custom_call.1} parent=15 // pred_region
          %s447 = sand.u32 %s31, 1
          %s448 = scalar_lea.sflag [#allocation6], %s447
          %s449 = sand.u32 %s79, 1
          %s450 = smul.addr %s449, 192
          %s451 = scalar_lea.vmem [#allocation5], %s450
          %s453 = ssub.s32 3072, 3072
          %454 = vsyncadd %s448, %s453
          %s455 = smul.addr %s39, 48
          %s456 = smul.addr %s455, 64
          %s457 = scalar_lea.hbm %s1, %s456
          %s458 = sshll.u32 %s451, 4
          %s459 = int_to_ptr.vmem [resolvable:$true] %s458
          %464 = dma.hbm_to_vmem [thread:$0]  %s457, 3072, %s459, %s448, 192, 192, 12
        $region24: #{tpu_custom_call.1} parent=15 // pred_fallthru
          _
        // Predicated region
        $region25: #{tpu_custom_call.1} parent=15 // pred_check
          %p465 = pneg %p115
        $region26: #{tpu_custom_call.1} parent=15 // pred_check_branch
          %467 = sbr.rel (%p465) target = $region28
        $region27: #{tpu_custom_call.1} parent=15 // pred_region
          %p468 = scmp.lt.s32.totalorder %s39, 1
          %s469 = scalar_select %p468, %s39, 1
          %s470 = smul.addr %s469, 3
          %s471 = scalar_lea.vmem %s2, %s470
        $region28: #{tpu_custom_call.1} parent=15 // pred_fallthru
          _
        // Predicated region
        $region29: #{tpu_custom_call.1} parent=15 // pred_check
          %p472 = pneg %p141
        $region30: #{tpu_custom_call.1} parent=15 // pred_check_branch
          %474 = sbr.rel (%p472) target = $region32
        $region31: #{tpu_custom_call.1} parent=15 // pred_region
          %s475 = sand.u32 %s31, 1
          %s476 = scalar_lea.sflag [#allocation6], %s475
          %s477 = sand.u32 %s131, 1
          %s478 = smul.addr %s477, 64
          %s479 = scalar_lea.vmem [#allocation7], %s478
          %s481 = ssub.s32 1024, 1024
          %482 = vsyncadd %s476, %s481
          %s483 = smul.addr %s39, 16
          %s484 = smul.addr %s483, 64
          %s485 = scalar_lea.hbm %s3, %s484
          %s486 = sshll.u32 %s479, 4
          %s487 = int_to_ptr.vmem [resolvable:$true] %s486
          %492 = dma.hbm_to_vmem [thread:$0]  %s485, 1024, %s487, %s476, 64, 64, 4
        $region32: #{tpu_custom_call.1} parent=15 // pred_fallthru
          _
        // Predicated region
        $region33: #{tpu_custom_call.1} parent=15 // pred_check
          %p493 = pneg %p167
        $region34: #{tpu_custom_call.1} parent=15 // pred_check_branch
          %495 = sbr.rel (%p493) target = $region36
        $region35: #{tpu_custom_call.1} parent=15 // pred_region
          %p496 = scmp.lt.s32.totalorder %s39, 1
          %s497 = scalar_select %p496, %s39, 1
          %s498 = scalar_lea.vmem %s4, %s497
        $region36: #{tpu_custom_call.1} parent=15 // pred_fallthru
          _
        // Predicated region
        $region37: #{tpu_custom_call.1} parent=15 // pred_check
          %p499 = pneg %p193
        $region38: #{tpu_custom_call.1} parent=15 // pred_check_branch
          %501 = sbr.rel (%p499) target = $region40
        $region39: #{tpu_custom_call.1} parent=15 // pred_region
          %p502 = scmp.lt.s32.totalorder %s39, 1
          %s503 = scalar_select %p502, %s39, 1
          %s504 = scalar_lea.vmem %s5, %s503
        $region40: #{tpu_custom_call.1} parent=15 // pred_fallthru
          _
        // Predicated region
        $region41: #{tpu_custom_call.1} parent=15 // pred_check
          %p505 = pneg %p219
        $region42: #{tpu_custom_call.1} parent=15 // pred_check_branch
          %507 = sbr.rel (%p505) target = $region44
        $region43: #{tpu_custom_call.1} parent=15 // pred_region
          %p508 = scmp.lt.s32.totalorder %s39, 1
          %s509 = scalar_select %p508, %s39, 1
          %s510 = scalar_lea.vmem %s6, %s509
        $region44: #{tpu_custom_call.1} parent=15 // pred_fallthru
          _
        // Predicated region
        $region45: #{tpu_custom_call.1} parent=15 // pred_check
          %p511 = pneg %p245
        $region46: #{tpu_custom_call.1} parent=15 // pred_check_branch
          %513 = sbr.rel (%p511) target = $region48
        $region47: #{tpu_custom_call.1} parent=15 // pred_region
          %s514 = sand.u32 %s31, 1
          %s515 = scalar_lea.sflag [#allocation9], %s514
          %s516 = sand.u32 %s235, 1
          %s517 = smul.addr %s516, 128
          %s518 = scalar_lea.vmem [#allocation8], %s517
          %s520 = ssub.s32 2048, 2048
          %521 = vsyncadd %s515, %s520
          %s522 = smul.addr %s39, 32
          %s523 = smul.addr %s522, 64
          %s524 = scalar_lea.hbm %s7, %s523
          %s525 = sshll.u32 %s518, 4
          %s526 = int_to_ptr.vmem [resolvable:$true] %s525
          %531 = dma.hbm_to_vmem [thread:$0]  %s524, 2048, %s526, %s515, 128, 128, 8
        $region48: #{tpu_custom_call.1} parent=15 // pred_fallthru
          _
        // Predicated region
        $region49: #{tpu_custom_call.1} parent=15 // pred_check
          %p532 = pneg %p271
        $region50: #{tpu_custom_call.1} parent=15 // pred_check_branch
          %534 = sbr.rel (%p532) target = $region52
        $region51: #{tpu_custom_call.1} parent=15 // pred_region
          %p535 = scmp.lt.s32.totalorder %s39, 1
          %s536 = scalar_select %p535, %s39, 1
          %s537 = smul.addr %s536, 2
          %s538 = scalar_lea.vmem %s8, %s537
        $region52: #{tpu_custom_call.1} parent=15 // pred_fallthru
          _
        // Predicated region
        $region53: #{tpu_custom_call.1} parent=15 // pred_check
          %p539 = pneg %p297
        $region54: #{tpu_custom_call.1} parent=15 // pred_check_branch
          %541 = sbr.rel (%p539) target = $region56
        $region55: #{tpu_custom_call.1} parent=15 // pred_region
          %s542 = sand.u32 %s31, 1
          %s543 = scalar_lea.sflag [#allocation9], %s542
          %s544 = sand.u32 %s287, 1
          %s545 = smul.addr %s544, 128
          %s546 = scalar_lea.vmem [#allocation10], %s545
          %s548 = ssub.s32 2048, 2048
          %549 = vsyncadd %s543, %s548
          %s550 = smul.addr %s39, 32
          %s551 = smul.addr %s550, 64
          %s552 = scalar_lea.hbm %s9, %s551
          %s553 = sshll.u32 %s546, 4
          %s554 = int_to_ptr.vmem [resolvable:$true] %s553
          %559 = dma.hbm_to_vmem [thread:$0]  %s552, 2048, %s554, %s543, 64, 64, 4
        $region56: #{tpu_custom_call.1} parent=15 // pred_fallthru
          _
        // Predicated region
        $region57: #{tpu_custom_call.1} parent=15 // pred_check
          %p560 = pneg %p323
        $region58: #{tpu_custom_call.1} parent=15 // pred_check_branch
          %562 = sbr.rel (%p560) target = $region60
        $region59: #{tpu_custom_call.1} parent=15 // pred_region
          %p563 = scmp.lt.s32.totalorder %s39, 1
          %s564 = scalar_select %p563, %s39, 1
          %s565 = scalar_lea.vmem %s10, %s564
        $region60: #{tpu_custom_call.1} parent=15 // pred_fallthru
          _
        // Predicated region
        $region61: #{tpu_custom_call.1} parent=15 // pred_check
          %p566 = pneg %p349
        $region62: #{tpu_custom_call.1} parent=15 // pred_check_branch
          %568 = sbr.rel (%p566) target = $region64
        $region63: #{tpu_custom_call.1} parent=15 // pred_region
          %p569 = scmp.lt.s32.totalorder %s39, 1
          %s570 = scalar_select %p569, %s39, 1
          %s571 = scalar_lea.vmem %s11, %s570
        $region64: #{tpu_custom_call.1} parent=15 // pred_fallthru
          _
        // Predicated region
        $region65: #{tpu_custom_call.1} parent=15 // pred_check
          %p572 = pneg %p375
        $region66: #{tpu_custom_call.1} parent=15 // pred_check_branch
          %574 = sbr.rel (%p572) target = $region68
        $region67: #{tpu_custom_call.1} parent=15 // pred_region
          %p575 = scmp.lt.s32.totalorder %s39, 1
          %s576 = scalar_select %p575, %s39, 1
          %s577 = scalar_lea.vmem %s12, %s576
        $region68: #{tpu_custom_call.1} parent=15 // pred_fallthru
          _
      $region16: #{tpu_custom_call.1} parent=5 // pred_fallthru
        _
      %p578 = scmp.le.s32.totalorder 1, %s31
      %p579 = scmp.lt.s32.totalorder %s31, 5
      %p580 = pnand %p578, %p579
      %p581 = pneg %p580
      // Predicated region
      $region69: #{tpu_custom_call.1} parent=5 // pred_check
        _
      $region70: #{tpu_custom_call.1} parent=5 // pred_check_branch
        %583 = sbr.rel (%p580) target = $region72
      $region71: #{tpu_custom_call.1} parent=5 // pred_region
        %s584 = ssub.s32 %s31, 1
        %s585 = sand.u32 %s56, 1
        %s586 = scalar_lea.sflag [#allocation3], %s585
        %s587 = sand.u32 %s56, 1
        %s588 = smul.addr %s587, 8
        %s589 = scalar_lea.vmem [#allocation2], %s588
        // Predicated region
        $region73: #{tpu_custom_call.1} parent=71 // pred_check
          %p590 = pneg %p69
        $region74: #{tpu_custom_call.1} parent=71 // pred_check_branch
          %592 = sbr.rel (%p590) target = $region76
        $region75: #{tpu_custom_call.1} parent=71 // pred_region
          %593 = dma.done %s586, 128
        $region76: #{tpu_custom_call.1} parent=71 // pred_fallthru
          _
        %s594 = sand.u32 %s36, 1
        %s595 = scalar_lea.sflag [#allocation6], %s594
        %s596 = sand.u32 %s82, 1
        %s597 = smul.addr %s596, 192
        %s598 = scalar_lea.vmem [#allocation5], %s597
        // Predicated region
        $region77: #{tpu_custom_call.1} parent=71 // pred_check
          %p599 = pneg %p95
        $region78: #{tpu_custom_call.1} parent=71 // pred_check_branch
          %601 = sbr.rel (%p599) target = $region80
        $region79: #{tpu_custom_call.1} parent=71 // pred_region
          %602 = dma.done %s595, 3072
        $region80: #{tpu_custom_call.1} parent=71 // pred_fallthru
          _
        %s603 = sand.u32 %s36, 1
        %s604 = scalar_lea.sflag [#allocation6], %s603
        %s605 = sand.u32 %s134, 1
        %s606 = smul.addr %s605, 64
        %s607 = scalar_lea.vmem [#allocation7], %s606
        // Predicated region
        $region81: #{tpu_custom_call.1} parent=71 // pred_check
          %p608 = pneg %p147
        $region82: #{tpu_custom_call.1} parent=71 // pred_check_branch
          %610 = sbr.rel (%p608) target = $region84
        $region83: #{tpu_custom_call.1} parent=71 // pred_region
          %611 = dma.done %s604, 1024
        $region84: #{tpu_custom_call.1} parent=71 // pred_fallthru
          _
        %s612 = sand.u32 %s36, 1
        %s613 = scalar_lea.sflag [#allocation9], %s612
        %s614 = sand.u32 %s238, 1
        %s615 = smul.addr %s614, 128
        %s616 = scalar_lea.vmem [#allocation8], %s615
        // Predicated region
        $region85: #{tpu_custom_call.1} parent=71 // pred_check
          %p617 = pneg %p251
        $region86: #{tpu_custom_call.1} parent=71 // pred_check_branch
          %619 = sbr.rel (%p617) target = $region88
        $region87: #{tpu_custom_call.1} parent=71 // pred_region
          %620 = dma.done %s613, 2048
        $region88: #{tpu_custom_call.1} parent=71 // pred_fallthru
          _
        %s621 = sand.u32 %s36, 1
        %s622 = scalar_lea.sflag [#allocation9], %s621
        %s623 = sand.u32 %s290, 1
        %s624 = smul.addr %s623, 128
        %s625 = scalar_lea.vmem [#allocation10], %s624
        // Predicated region
        $region89: #{tpu_custom_call.1} parent=71 // pred_check
          %p626 = pneg %p303
        $region90: #{tpu_custom_call.1} parent=71 // pred_check_branch
          %628 = sbr.rel (%p626) target = $region92
        $region91: #{tpu_custom_call.1} parent=71 // pred_region
          %629 = dma.done %s622, 2048
        $region92: #{tpu_custom_call.1} parent=71 // pred_fallthru
          _
        %s630 = sand.u32 %s56, 1
        %s631 = scalar_lea.sflag [#allocation3], %s630
        %s632 = sand.u32 %s56, 1
        %s633 = smul.addr %s632, 8
        %s634 = scalar_lea.vmem [#allocation2], %s633
        %p635 = pneg %p69
        %p636 = pneg %p66
        %s637 = sand.u32 %s36, 1
        %s638 = scalar_lea.sflag [#allocation6], %s637
        %s639 = sand.u32 %s82, 1
        %s640 = smul.addr %s639, 192
        %s641 = scalar_lea.vmem [#allocation5], %s640
        %p642 = pneg %p95
        %p643 = pneg %p92
        %p644 = scmp.lt.s32.totalorder %s41, 1
        %s645 = scalar_select %p644, %s41, 1
        %s646 = smul.addr %s645, 3
        %s647 = scalar_lea.vmem %s2, %s646
        %p648 = pneg %p121
        %p649 = pneg %p118
        %s650 = sand.u32 %s36, 1
        %s651 = scalar_lea.sflag [#allocation6], %s650
        %s652 = sand.u32 %s134, 1
        %s653 = smul.addr %s652, 64
        %s654 = scalar_lea.vmem [#allocation7], %s653
        %p655 = pneg %p147
        %p656 = pneg %p144
        %p657 = scmp.lt.s32.totalorder %s41, 1
        %s658 = scalar_select %p657, %s41, 1
        %s659 = scalar_lea.vmem %s4, %s658
        %p660 = pneg %p173
        %p661 = pneg %p170
        %p662 = scmp.lt.s32.totalorder %s41, 1
        %s663 = scalar_select %p662, %s41, 1
        %s664 = scalar_lea.vmem %s5, %s663
        %p665 = pneg %p199
        %p666 = pneg %p196
        %p667 = scmp.lt.s32.totalorder %s41, 1
        %s668 = scalar_select %p667, %s41, 1
        %s669 = scalar_lea.vmem %s6, %s668
        %p670 = pneg %p225
        %p671 = pneg %p222
        %s672 = sand.u32 %s36, 1
        %s673 = scalar_lea.sflag [#allocation9], %s672
        %s674 = sand.u32 %s238, 1
        %s675 = smul.addr %s674, 128
        %s676 = scalar_lea.vmem [#allocation8], %s675
        %p677 = pneg %p251
        %p678 = pneg %p248
        %p679 = scmp.lt.s32.totalorder %s41, 1
        %s680 = scalar_select %p679, %s41, 1
        %s681 = smul.addr %s680, 2
        %s682 = scalar_lea.vmem %s8, %s681
        %p683 = pneg %p277
        %p684 = pneg %p274
        %s685 = sand.u32 %s36, 1
        %s686 = scalar_lea.sflag [#allocation9], %s685
        %s687 = sand.u32 %s290, 1
        %s688 = smul.addr %s687, 128
        %s689 = scalar_lea.vmem [#allocation10], %s688
        %p690 = pneg %p303
        %p691 = pneg %p300
        %p692 = scmp.lt.s32.totalorder %s41, 1
        %s693 = scalar_select %p692, %s41, 1
        %s694 = scalar_lea.vmem %s10, %s693
        %p695 = pneg %p329
        %p696 = pneg %p326
        %p697 = scmp.lt.s32.totalorder %s41, 1
        %s698 = scalar_select %p697, %s41, 1
        %s699 = scalar_lea.vmem %s11, %s698
        %p700 = pneg %p355
        %p701 = pneg %p352
        %p702 = scmp.lt.s32.totalorder %s41, 1
        %s703 = scalar_select %p702, %s41, 1
        %s704 = scalar_lea.vmem %s12, %s703
        %p705 = pneg %p381
        %p706 = pneg %p378
        %p707 = pneg %p407
        %p708 = pneg %p404
        %s709 = sand.u32 %s394, 1
        %s710 = scalar_lea.sflag [#allocation4], %s709
        %s711 = sand.u32 %s394, 1
        %s712 = smul.addr %s711, 8
        %s713 = scalar_lea.vmem [#allocation11], %s712
        %p714 = scmp.lt.s32.totalorder %s41, 1
        %s715 = scalar_select %p714, %s41, 1
        %s716 = smul.addr %s715, 3
        %s717 = scalar_lea.vmem %s2, %s716
        %p718 = scmp.lt.s32.totalorder %s41, 1
        %s719 = scalar_select %p718, %s41, 1
        %s720 = scalar_lea.vmem %s4, %s719
        %p721 = scmp.lt.s32.totalorder %s41, 1
        %s722 = scalar_select %p721, %s41, 1
        %s723 = scalar_lea.vmem %s5, %s722
        %p724 = scmp.lt.s32.totalorder %s41, 1
        %s725 = scalar_select %p724, %s41, 1
        %s726 = scalar_lea.vmem %s6, %s725
        %p727 = scmp.lt.s32.totalorder %s41, 1
        %s728 = scalar_select %p727, %s41, 1
        %s729 = smul.addr %s728, 2
        %s730 = scalar_lea.vmem %s8, %s729
        %p731 = scmp.lt.s32.totalorder %s41, 1
        %s732 = scalar_select %p731, %s41, 1
        %s733 = scalar_lea.vmem %s10, %s732
        %p734 = scmp.lt.s32.totalorder %s41, 1
        %s735 = scalar_select %p734, %s41, 1
        %s736 = scalar_lea.vmem %s11, %s735
        %p737 = scmp.lt.s32.totalorder %s41, 1
        %s738 = scalar_select %p737, %s41, 1
        %s739 = scalar_lea.vmem %s12, %s738
        %p741 = scmp.eq.s32.totalorder %s41, 0
        // Predicated region
        $region93: #{tpu_custom_call.1} parent=71 // pred_check
          %p742 = pneg %p741
        $region94: #{tpu_custom_call.1} parent=71 // pred_check_branch
          %744 = sbr.rel (%p742) target = $region96
        $region95: #{tpu_custom_call.1} parent=71 // pred_region
          %v745 = vld [vmem:[%s589] sm:$0xff]
          %746 = vst [vmem:[%s713] sm:$0xff] %v745
        $region96: #{tpu_custom_call.1} parent=71 // pred_fallthru
          _
        %v747 = vld [vmem:[%s713] sm:$0xff]
        %v748 = vpack.c.bf16 %v747, %v747
        %v749 = vld [vmem:[%s598] sm:$0xff]
        %v750 = vld [vmem:[%s598 + $0x8] sm:$0xf]
        %v751 = vld [vmem:[%s598 + $0xc] sm:$0xff]
        %v752 = vld [vmem:[%s598 + $0x14] sm:$0xf]
        %v753 = vld [vmem:[%s598 + $0x18] sm:$0xff]
        %v754 = vld [vmem:[%s598 + $0x20] sm:$0xf]
        %v755 = vld [vmem:[%s598 + $0x24] sm:$0xff]
        %v756 = vld [vmem:[%s598 + $0x2c] sm:$0xf]
        %v757 = vld [vmem:[%s598 + $0x30] sm:$0xff]
        %v758 = vld [vmem:[%s598 + $0x38] sm:$0xf]
        %v759 = vld [vmem:[%s598 + $0x3c] sm:$0xff]
        %v760 = vld [vmem:[%s598 + $0x44] sm:$0xf]
        %v761 = vld [vmem:[%s598 + $0x48] sm:$0xff]
        %v762 = vld [vmem:[%s598 + $0x50] sm:$0xf]
        %v763 = vld [vmem:[%s598 + $0x54] sm:$0xff]
        %v764 = vld [vmem:[%s598 + $0x5c] sm:$0xf]
        %v765 = vld [vmem:[%s598 + $0x60] sm:$0xff]
        %v766 = vld [vmem:[%s598 + $0x68] sm:$0xf]
        %v767 = vld [vmem:[%s598 + $0x6c] sm:$0xff]
        %v768 = vld [vmem:[%s598 + $0x74] sm:$0xf]
        %v769 = vld [vmem:[%s598 + $0x78] sm:$0xff]
        %v770 = vld [vmem:[%s598 + $0x80] sm:$0xf]
        %v771 = vld [vmem:[%s598 + $0x84] sm:$0xff]
        %v772 = vld [vmem:[%s598 + $0x8c] sm:$0xf]
        %v773 = vld [vmem:[%s598 + $0x90] sm:$0xff]
        %v774 = vld [vmem:[%s598 + $0x98] sm:$0xf]
        %v775 = vld [vmem:[%s598 + $0x9c] sm:$0xff]
        %v776 = vld [vmem:[%s598 + $0xa4] sm:$0xf]
        %v777 = vld [vmem:[%s598 + $0xa8] sm:$0xff]
        %v778 = vld [vmem:[%s598 + $0xb0] sm:$0xf]
        %v779 = vld [vmem:[%s598 + $0xb4] sm:$0xff]
        %v780 = vld [vmem:[%s598 + $0xbc] sm:$0xf]
        %v781 = vld [vmem:[%s717] sm:$0x7]
        %v783 = vlaneseq
        %v784 = vshrl.u32 %v783, 7
        %v785 = vsub.s32 0, %v784
        %v786 = vrot.slane %v781, %v785
        %v787 = vlaneseq
        %v788 = vshrl.u32 %v787, 7
        %v789 = vsub.s32 1, %v788
        %v790 = vrot.slane %v781, %v789
        %v791 = vlaneseq
        %v792 = vshrl.u32 %v791, 7
        %v793 = vsub.s32 2, %v792
        %v794 = vrot.slane %v781, %v793
        %v830 = vunpack.c.l.b16 %v749
        %v831 = vunpack.c.h.b16 %v749
        %v832 = vunpack.c.l.b16 %v750
        %v833 = vunpack.c.l.b16 %v751
        %v834 = vunpack.c.h.b16 %v751
        %v835 = vunpack.c.l.b16 %v752
        %v836 = vunpack.c.l.b16 %v753
        %v837 = vunpack.c.h.b16 %v753
        %v838 = vunpack.c.l.b16 %v754
        %v839 = vunpack.c.l.b16 %v755
        %v840 = vunpack.c.h.b16 %v755
        %v841 = vunpack.c.l.b16 %v756
        %v842 = vunpack.c.l.b16 %v757
        %v843 = vunpack.c.h.b16 %v757
        %v844 = vunpack.c.l.b16 %v758
        %v845 = vunpack.c.l.b16 %v759
        %v846 = vunpack.c.h.b16 %v759
        %v847 = vunpack.c.l.b16 %v760
        %v848 = vunpack.c.l.b16 %v761
        %v849 = vunpack.c.h.b16 %v761
        %v850 = vunpack.c.l.b16 %v762
        %v851 = vunpack.c.l.b16 %v763
        %v852 = vunpack.c.h.b16 %v763
        %v853 = vunpack.c.l.b16 %v764
        %v854 = vunpack.c.l.b16 %v765
        %v855 = vunpack.c.h.b16 %v765
        %v856 = vunpack.c.l.b16 %v766
        %v857 = vunpack.c.l.b16 %v767
        %v858 = vunpack.c.h.b16 %v767
        %v859 = vunpack.c.l.b16 %v768
        %v860 = vunpack.c.l.b16 %v769
        %v861 = vunpack.c.h.b16 %v769
        %v862 = vunpack.c.l.b16 %v770
        %v863 = vunpack.c.l.b16 %v771
        %v864 = vunpack.c.h.b16 %v771
        %v865 = vunpack.c.l.b16 %v772
        %v866 = vunpack.c.l.b16 %v773
        %v867 = vunpack.c.h.b16 %v773
        %v868 = vunpack.c.l.b16 %v774
        %v869 = vunpack.c.l.b16 %v775
        %v870 = vunpack.c.h.b16 %v775
        %v871 = vunpack.c.l.b16 %v776
        %v872 = vunpack.c.l.b16 %v777
        %v873 = vunpack.c.h.b16 %v777
        %v874 = vunpack.c.l.b16 %v778
        %v875 = vunpack.c.l.b16 %v779
        %v876 = vunpack.c.h.b16 %v779
        %v877 = vunpack.c.l.b16 %v780
        %v878 = vpack.c.b16 %v833, %v830
        %v879 = vpack.c.b16 %v834, %v831
        %v880 = vpack.c.b16 %v835, %v832
        %v881 = vpack.c.b16 %v839, %v836
        %v882 = vpack.c.b16 %v840, %v837
        %v883 = vpack.c.b16 %v841, %v838
        %v884 = vpack.c.b16 %v845, %v842
        %v885 = vpack.c.b16 %v846, %v843
        %v886 = vpack.c.b16 %v847, %v844
        %v887 = vpack.c.b16 %v851, %v848
        %v888 = vpack.c.b16 %v852, %v849
        %v889 = vpack.c.b16 %v853, %v850
        %v890 = vpack.c.b16 %v857, %v854
        %v891 = vpack.c.b16 %v858, %v855
        %v892 = vpack.c.b16 %v859, %v856
        %v893 = vpack.c.b16 %v863, %v860
        %v894 = vpack.c.b16 %v864, %v861
        %v895 = vpack.c.b16 %v865, %v862
        %v896 = vpack.c.b16 %v869, %v866
        %v897 = vpack.c.b16 %v870, %v867
        %v898 = vpack.c.b16 %v871, %v868
        %v899 = vpack.c.b16 %v875, %v872
        %v900 = vpack.c.b16 %v876, %v873
        %v901 = vpack.c.b16 %v877, %v874
        %926 = vmatprep.subr.bf16.mxu0 %v879
        %927 = vmatpush1.bf16.msra.mxu0 %v878
        %928 = vmatprep.subr.bf16.mxu0 %v882
        %929 = vmatpush1.bf16.msra.mxu0 %v881
        %930 = vmatprep.subr.bf16.mxu0 %v885
        %931 = vmatpush1.bf16.msra.mxu0 %v884
        %932 = vmatprep.subr.bf16.mxu0 %v888
        %933 = vmatpush1.bf16.msra.mxu0 %v887
        %934 = vmatprep.subr.bf16.mxu0 %v891
        %935 = vmatpush1.bf16.msra.mxu0 %v890
        %936 = vmatprep.subr.bf16.mxu0 %v894
        %937 = vmatpush1.bf16.msra.mxu0 %v893
        %938 = vmatprep.subr.bf16.mxu0 %v897
        %939 = vmatpush1.bf16.msra.mxu0 %v896
        %940 = vmatprep.subr.bf16.mxu0 %v900
        %941 = vmatpush1.bf16.msra.mxu0 %v899
        %942 = vmatprep.subr.bf16.mxu0 0
        %943 = vmatpush1.bf16.msra.mxu0 0
        %944 = vmatprep.subr.bf16.mxu0 0
        %945 = vmatpush1.bf16.msra.mxu0 0
        %946 = vmatprep.subr.bf16.mxu0 0
        %947 = vmatpush1.bf16.msra.mxu0 0
        %948 = vmatprep.subr.bf16.mxu0 0
        %949 = vmatpush1.bf16.msra.mxu0 0
        %950 = vmatprep.subr.bf16.mxu0 0
        %951 = vmatpush1.bf16.msra.mxu0 0
        %952 = vmatprep.subr.bf16.mxu0 0
        %953 = vmatpush1.bf16.msra.mxu0 0
        %954 = vmatprep.subr.bf16.mxu0 0
        %955 = vmatpush1.bf16.msra.mxu0 0
        %956 = vmatprep.subr.bf16.mxu0 0
        %957 = vmatpush1.bf16.msra.mxu0 0
        %958 = vmatprep.mubr.bf16.mxu0 0
        %959 = vmatmul.mubr.bf16.gmra.mrb[0].mxu0 %v748
        %v960 = vpop.f32.mrb[0].mxu0
        %v961 = vadd.f32 %v786, %v960
        %v962 = vpop.f32.mrb[0].mxu0
        %v963 = vadd.f32 %v790, %v962
        %v964 = vpop.f32.mrb[0].mxu0
        %v965 = vpop.f32.mrb[0].mxu0
        %966 = vdwg.mxu0
        %967 = vmatprep.subr.bf16.mxu0 0
        %968 = vmatpush1.bf16.msra.mxu0 %v880
        %969 = vmatprep.subr.bf16.mxu0 0
        %970 = vmatpush1.bf16.msra.mxu0 %v883
        %971 = vmatprep.subr.bf16.mxu0 0
        %972 = vmatpush1.bf16.msra.mxu0 %v886
        %973 = vmatprep.subr.bf16.mxu0 0
        %974 = vmatpush1.bf16.msra.mxu0 %v889
        %975 = vmatprep.subr.bf16.mxu0 0
        %976 = vmatpush1.bf16.msra.mxu0 %v892
        %977 = vmatprep.subr.bf16.mxu0 0
        %978 = vmatpush1.bf16.msra.mxu0 %v895
        %979 = vmatprep.subr.bf16.mxu0 0
        %980 = vmatpush1.bf16.msra.mxu0 %v898
        %981 = vmatprep.subr.bf16.mxu0 0
        %982 = vmatpush1.bf16.msra.mxu0 %v901
        %983 = vmatprep.subr.bf16.mxu0 0
        %984 = vmatpush1.bf16.msra.mxu0 0
        %985 = vmatprep.subr.bf16.mxu0 0
        %986 = vmatpush1.bf16.msra.mxu0 0
        %987 = vmatprep.subr.bf16.mxu0 0
        %988 = vmatpush1.bf16.msra.mxu0 0
        %989 = vmatprep.subr.bf16.mxu0 0
        %990 = vmatpush1.bf16.msra.mxu0 0
        %991 = vmatprep.subr.bf16.mxu0 0
        %992 = vmatpush1.bf16.msra.mxu0 0
        %993 = vmatprep.subr.bf16.mxu0 0
        %994 = vmatpush1.bf16.msra.mxu0 0
        %995 = vmatprep.subr.bf16.mxu0 0
        %996 = vmatpush1.bf16.msra.mxu0 0
        %997 = vmatprep.subr.bf16.mxu0 0
        %998 = vmatpush1.bf16.msra.mxu0 0
        %999 = vmatprep.mubr.bf16.mxu0 0
        %1000 = vmatmul.mubr.bf16.gmra.mrb[0].mxu0 %v748
        %v1001 = vpop.f32.mrb[0].mxu0
        %v1002 = vadd.f32 %v794, %v1001
        %v1003 = vpop.f32.mrb[0].mxu0
        %v1004 = vpop.f32.mrb[0].mxu0
        %v1005 = vpop.f32.mrb[0].mxu0
        %1006 = vdwg.mxu0
        %1008 = vrot.lane.b32.xlu0 %v961, 96
        %v1009 = vpop.permute.xlu0 %1008
        %1011 = vrot.lane.b32.xlu0 %v961, 64
        %v1012 = vpop.permute.xlu0 %1011
        %1014 = vrot.lane.b32.xlu0 %v961, 32
        %v1015 = vpop.permute.xlu0 %1014
        %v1017 = vcombine.low %v961, %v1012
        %v1018 = vcombine.high %v961, %v1012
        %v1020 = vunpack.c.l.s4 1983009808
        %v1021 = vunpack.c.0.s8 %v1020
        %v1022 = vlaneseq
        %v1023 = vshrl.u32 %v1022, 7
        %v1024 = vsub.s32 %v1021, %v1023
        %v1025 = vrot.slane %v1017, %v1024
        %v1027 = vunpack.c.l.s4 1983009808
        %v1028 = vunpack.c.0.s8 %v1027
        %v1029 = vlaneseq
        %v1030 = vshrl.u32 %v1029, 7
        %v1031 = vsub.s32 %v1028, %v1030
        %v1032 = vrot.slane %v1018, %v1031
        %v1033 = vcombine.low %v1009, %v1015
        %v1034 = vcombine.high %v1009, %v1015
        %v1036 = vunpack.c.l.s4 1983009808
        %v1037 = vunpack.c.0.s8 %v1036
        %v1038 = vlaneseq
        %v1039 = vshrl.u32 %v1038, 7
        %v1040 = vsub.s32 %v1037, %v1039
        %v1041 = vrot.slane %v1033, %v1040
        %v1043 = vunpack.c.l.s4 1983009808
        %v1044 = vunpack.c.0.s8 %v1043
        %v1045 = vlaneseq
        %v1046 = vshrl.u32 %v1045, 7
        %v1047 = vsub.s32 %v1044, %v1046
        %v1048 = vrot.slane %v1034, %v1047
        %v1049 = vcombine.low %v1025, %v1041
        %v1050 = vcombine.high %v1025, %v1041
        %v1052 = vunpack.c.l.s4 1934713408
        %v1053 = vunpack.c.0.s8 %v1052
        %v1054 = vlaneseq
        %v1055 = vshrl.u32 %v1054, 7
        %v1056 = vsub.s32 %v1053, %v1055
        %v1057 = vrot.slane %v1049, %v1056
        %v1059 = vunpack.c.l.s4 1934713408
        %v1060 = vunpack.c.0.s8 %v1059
        %v1061 = vlaneseq
        %v1062 = vshrl.u32 %v1061, 7
        %v1063 = vsub.s32 %v1060, %v1062
        %v1064 = vrot.slane %v1050, %v1063
        %v1065 = vcombine.low %v1032, %v1048
        %v1066 = vcombine.high %v1032, %v1048
        %v1068 = vunpack.c.l.s4 1934713408
        %v1069 = vunpack.c.0.s8 %v1068
        %v1070 = vlaneseq
        %v1071 = vshrl.u32 %v1070, 7
        %v1072 = vsub.s32 %v1069, %v1071
        %v1073 = vrot.slane %v1065, %v1072
        %v1075 = vunpack.c.l.s4 1934713408
        %v1076 = vunpack.c.0.s8 %v1075
        %v1077 = vlaneseq
        %v1078 = vshrl.u32 %v1077, 7
        %v1079 = vsub.s32 %v1076, %v1078
        %v1080 = vrot.slane %v1066, %v1079
        %v1081 = vcombine.high %v1057, 0.0
        %v1082 = vcombine.high %v1064, 0.0
        %v1083 = vcombine.high %v1073, 0.0
        %v1084 = vcombine.high %v1080, 0.0
        %v1085 = vcombine.low %v1057, %v1064
        %v1087 = vunpack.c.l.s4 1983009808
        %v1088 = vunpack.c.0.s8 %v1087
        %v1089 = vlaneseq
        %v1090 = vshrl.u32 %v1089, 7
        %v1091 = vsub.s32 %v1088, %v1090
        %v1092 = vrot.slane %v1085, %v1091
        %v1093 = vcombine.low %v1081, %v1082
        %v1095 = vunpack.c.l.s4 1983009808
        %v1096 = vunpack.c.0.s8 %v1095
        %v1097 = vlaneseq
        %v1098 = vshrl.u32 %v1097, 7
        %v1099 = vsub.s32 %v1096, %v1098
        %v1100 = vrot.slane %v1093, %v1099
        %v1101 = vcombine.low %v1073, %v1080
        %v1103 = vunpack.c.l.s4 1983009808
        %v1104 = vunpack.c.0.s8 %v1103
        %v1105 = vlaneseq
        %v1106 = vshrl.u32 %v1105, 7
        %v1107 = vsub.s32 %v1104, %v1106
        %v1108 = vrot.slane %v1101, %v1107
        %v1109 = vcombine.low %v1083, %v1084
        %v1111 = vunpack.c.l.s4 1983009808
        %v1112 = vunpack.c.0.s8 %v1111
        %v1113 = vlaneseq
        %v1114 = vshrl.u32 %v1113, 7
        %v1115 = vsub.s32 %v1112, %v1114
        %v1116 = vrot.slane %v1109, %v1115
        %v1117 = vcombine.low %v1092, %v1100
        %v1118 = vcombine.high %v1092, %v1100
        %v1120 = vunpack.c.l.s4 1934713408
        %v1121 = vunpack.c.0.s8 %v1120
        %v1122 = vlaneseq
        %v1123 = vshrl.u32 %v1122, 7
        %v1124 = vsub.s32 %v1121, %v1123
        %v1125 = vrot.slane %v1117, %v1124
        %v1127 = vunpack.c.l.s4 1934713408
        %v1128 = vunpack.c.0.s8 %v1127
        %v1129 = vlaneseq
        %v1130 = vshrl.u32 %v1129, 7
        %v1131 = vsub.s32 %v1128, %v1130
        %v1132 = vrot.slane %v1118, %v1131
        %v1133 = vcombine.low %v1108, %v1116
        %v1134 = vcombine.high %v1108, %v1116
        %v1136 = vunpack.c.l.s4 1934713408
        %v1137 = vunpack.c.0.s8 %v1136
        %v1138 = vlaneseq
        %v1139 = vshrl.u32 %v1138, 7
        %v1140 = vsub.s32 %v1137, %v1139
        %v1141 = vrot.slane %v1133, %v1140
        %v1143 = vunpack.c.l.s4 1934713408
        %v1144 = vunpack.c.0.s8 %v1143
        %v1145 = vlaneseq
        %v1146 = vshrl.u32 %v1145, 7
        %v1147 = vsub.s32 %v1144, %v1146
        %v1148 = vrot.slane %v1134, %v1147
        %v1149 = vcombine.low %v1125, %v1141
        %v1150 = vcombine.high %v1125, %v1141
        %v1151 = vcombine.low %v1132, %v1148
        %v1152 = vcombine.high %v1132, %v1148
        %1154 = vrot.lane.b32.xlu0 %v963, 96
        %v1155 = vpop.permute.xlu0 %1154
        %1157 = vrot.lane.b32.xlu0 %v963, 64
        %v1158 = vpop.permute.xlu0 %1157
        %1160 = vrot.lane.b32.xlu0 %v963, 32
        %v1161 = vpop.permute.xlu0 %1160
        %v1163 = vcombine.low %v963, %v1158
        %v1164 = vcombine.high %v963, %v1158
        %v1166 = vunpack.c.l.s4 1983009808
        %v1167 = vunpack.c.0.s8 %v1166
        %v1168 = vlaneseq
        %v1169 = vshrl.u32 %v1168, 7
        %v1170 = vsub.s32 %v1167, %v1169
        %v1171 = vrot.slane %v1163, %v1170
        %v1173 = vunpack.c.l.s4 1983009808
        %v1174 = vunpack.c.0.s8 %v1173
        %v1175 = vlaneseq
        %v1176 = vshrl.u32 %v1175, 7
        %v1177 = vsub.s32 %v1174, %v1176
        %v1178 = vrot.slane %v1164, %v1177
        %v1179 = vcombine.low %v1155, %v1161
        %v1180 = vcombine.high %v1155, %v1161
        %v1182 = vunpack.c.l.s4 1983009808
        %v1183 = vunpack.c.0.s8 %v1182
        %v1184 = vlaneseq
        %v1185 = vshrl.u32 %v1184, 7
        %v1186 = vsub.s32 %v1183, %v1185
        %v1187 = vrot.slane %v1179, %v1186
        %v1189 = vunpack.c.l.s4 1983009808
        %v1190 = vunpack.c.0.s8 %v1189
        %v1191 = vlaneseq
        %v1192 = vshrl.u32 %v1191, 7
        %v1193 = vsub.s32 %v1190, %v1192
        %v1194 = vrot.slane %v1180, %v1193
        %v1195 = vcombine.low %v1171, %v1187
        %v1196 = vcombine.high %v1171, %v1187
        %v1198 = vunpack.c.l.s4 1934713408
        %v1199 = vunpack.c.0.s8 %v1198
        %v1200 = vlaneseq
        %v1201 = vshrl.u32 %v1200, 7
        %v1202 = vsub.s32 %v1199, %v1201
        %v1203 = vrot.slane %v1195, %v1202
        %v1205 = vunpack.c.l.s4 1934713408
        %v1206 = vunpack.c.0.s8 %v1205
        %v1207 = vlaneseq
        %v1208 = vshrl.u32 %v1207, 7
        %v1209 = vsub.s32 %v1206, %v1208
        %v1210 = vrot.slane %v1196, %v1209
        %v1211 = vcombine.low %v1178, %v1194
        %v1212 = vcombine.high %v1178, %v1194
        %v1214 = vunpack.c.l.s4 1934713408
        %v1215 = vunpack.c.0.s8 %v1214
        %v1216 = vlaneseq
        %v1217 = vshrl.u32 %v1216, 7
        %v1218 = vsub.s32 %v1215, %v1217
        %v1219 = vrot.slane %v1211, %v1218
        %v1221 = vunpack.c.l.s4 1934713408
        %v1222 = vunpack.c.0.s8 %v1221
        %v1223 = vlaneseq
        %v1224 = vshrl.u32 %v1223, 7
        %v1225 = vsub.s32 %v1222, %v1224
        %v1226 = vrot.slane %v1212, %v1225
        %v1227 = vcombine.high %v1203, 0.0
        %v1228 = vcombine.high %v1210, 0.0
        %v1229 = vcombine.high %v1219, 0.0
        %v1230 = vcombine.high %v1226, 0.0
        %v1231 = vcombine.low %v1203, %v1210
        %v1233 = vunpack.c.l.s4 1983009808
        %v1234 = vunpack.c.0.s8 %v1233
        %v1235 = vlaneseq
        %v1236 = vshrl.u32 %v1235, 7
        %v1237 = vsub.s32 %v1234, %v1236
        %v1238 = vrot.slane %v1231, %v1237
        %v1239 = vcombine.low %v1227, %v1228
        %v1241 = vunpack.c.l.s4 1983009808
        %v1242 = vunpack.c.0.s8 %v1241
        %v1243 = vlaneseq
        %v1244 = vshrl.u32 %v1243, 7
        %v1245 = vsub.s32 %v1242, %v1244
        %v1246 = vrot.slane %v1239, %v1245
        %v1247 = vcombine.low %v1219, %v1226
        %v1249 = vunpack.c.l.s4 1983009808
        %v1250 = vunpack.c.0.s8 %v1249
        %v1251 = vlaneseq
        %v1252 = vshrl.u32 %v1251, 7
        %v1253 = vsub.s32 %v1250, %v1252
        %v1254 = vrot.slane %v1247, %v1253
        %v1255 = vcombine.low %v1229, %v1230
        %v1257 = vunpack.c.l.s4 1983009808
        %v1258 = vunpack.c.0.s8 %v1257
        %v1259 = vlaneseq
        %v1260 = vshrl.u32 %v1259, 7
        %v1261 = vsub.s32 %v1258, %v1260
        %v1262 = vrot.slane %v1255, %v1261
        %v1263 = vcombine.low %v1238, %v1246
        %v1264 = vcombine.high %v1238, %v1246
        %v1266 = vunpack.c.l.s4 1934713408
        %v1267 = vunpack.c.0.s8 %v1266
        %v1268 = vlaneseq
        %v1269 = vshrl.u32 %v1268, 7
        %v1270 = vsub.s32 %v1267, %v1269
        %v1271 = vrot.slane %v1263, %v1270
        %v1273 = vunpack.c.l.s4 1934713408
        %v1274 = vunpack.c.0.s8 %v1273
        %v1275 = vlaneseq
        %v1276 = vshrl.u32 %v1275, 7
        %v1277 = vsub.s32 %v1274, %v1276
        %v1278 = vrot.slane %v1264, %v1277
        %v1279 = vcombine.low %v1254, %v1262
        %v1280 = vcombine.high %v1254, %v1262
        %v1282 = vunpack.c.l.s4 1934713408
        %v1283 = vunpack.c.0.s8 %v1282
        %v1284 = vlaneseq
        %v1285 = vshrl.u32 %v1284, 7
        %v1286 = vsub.s32 %v1283, %v1285
        %v1287 = vrot.slane %v1279, %v1286
        %v1289 = vunpack.c.l.s4 1934713408
        %v1290 = vunpack.c.0.s8 %v1289
        %v1291 = vlaneseq
        %v1292 = vshrl.u32 %v1291, 7
        %v1293 = vsub.s32 %v1290, %v1292
        %v1294 = vrot.slane %v1280, %v1293
        %v1295 = vcombine.low %v1271, %v1287
        %v1296 = vcombine.high %v1271, %v1287
        %v1297 = vcombine.low %v1278, %v1294
        %v1298 = vcombine.high %v1278, %v1294
        %1300 = vrot.lane.b32.xlu0 %v1002, 96
        %v1301 = vpop.permute.xlu0 %1300
        %1303 = vrot.lane.b32.xlu0 %v1002, 64
        %v1304 = vpop.permute.xlu0 %1303
        %1306 = vrot.lane.b32.xlu0 %v1002, 32
        %v1307 = vpop.permute.xlu0 %1306
        %v1309 = vcombine.low %v1002, %v1304
        %v1310 = vcombine.high %v1002, %v1304
        %v1312 = vunpack.c.l.s4 1983009808
        %v1313 = vunpack.c.0.s8 %v1312
        %v1314 = vlaneseq
        %v1315 = vshrl.u32 %v1314, 7
        %v1316 = vsub.s32 %v1313, %v1315
        %v1317 = vrot.slane %v1309, %v1316
        %v1319 = vunpack.c.l.s4 1983009808
        %v1320 = vunpack.c.0.s8 %v1319
        %v1321 = vlaneseq
        %v1322 = vshrl.u32 %v1321, 7
        %v1323 = vsub.s32 %v1320, %v1322
        %v1324 = vrot.slane %v1310, %v1323
        %v1325 = vcombine.low %v1301, %v1307
        %v1326 = vcombine.high %v1301, %v1307
        %v1328 = vunpack.c.l.s4 1983009808
        %v1329 = vunpack.c.0.s8 %v1328
        %v1330 = vlaneseq
        %v1331 = vshrl.u32 %v1330, 7
        %v1332 = vsub.s32 %v1329, %v1331
        %v1333 = vrot.slane %v1325, %v1332
        %v1335 = vunpack.c.l.s4 1983009808
        %v1336 = vunpack.c.0.s8 %v1335
        %v1337 = vlaneseq
        %v1338 = vshrl.u32 %v1337, 7
        %v1339 = vsub.s32 %v1336, %v1338
        %v1340 = vrot.slane %v1326, %v1339
        %v1341 = vcombine.low %v1317, %v1333
        %v1342 = vcombine.high %v1317, %v1333
        %v1344 = vunpack.c.l.s4 1934713408
        %v1345 = vunpack.c.0.s8 %v1344
        %v1346 = vlaneseq
        %v1347 = vshrl.u32 %v1346, 7
        %v1348 = vsub.s32 %v1345, %v1347
        %v1349 = vrot.slane %v1341, %v1348
        %v1351 = vunpack.c.l.s4 1934713408
        %v1352 = vunpack.c.0.s8 %v1351
        %v1353 = vlaneseq
        %v1354 = vshrl.u32 %v1353, 7
        %v1355 = vsub.s32 %v1352, %v1354
        %v1356 = vrot.slane %v1342, %v1355
        %v1357 = vcombine.low %v1324, %v1340
        %v1358 = vcombine.high %v1324, %v1340
        %v1360 = vunpack.c.l.s4 1934713408
        %v1361 = vunpack.c.0.s8 %v1360
        %v1362 = vlaneseq
        %v1363 = vshrl.u32 %v1362, 7
        %v1364 = vsub.s32 %v1361, %v1363
        %v1365 = vrot.slane %v1357, %v1364
        %v1367 = vunpack.c.l.s4 1934713408
        %v1368 = vunpack.c.0.s8 %v1367
        %v1369 = vlaneseq
        %v1370 = vshrl.u32 %v1369, 7
        %v1371 = vsub.s32 %v1368, %v1370
        %v1372 = vrot.slane %v1358, %v1371
        %v1373 = vcombine.high %v1349, 0.0
        %v1374 = vcombine.high %v1356, 0.0
        %v1375 = vcombine.high %v1365, 0.0
        %v1376 = vcombine.high %v1372, 0.0
        %v1377 = vcombine.low %v1349, %v1356
        %v1379 = vunpack.c.l.s4 1983009808
        %v1380 = vunpack.c.0.s8 %v1379
        %v1381 = vlaneseq
        %v1382 = vshrl.u32 %v1381, 7
        %v1383 = vsub.s32 %v1380, %v1382
        %v1384 = vrot.slane %v1377, %v1383
        %v1385 = vcombine.low %v1373, %v1374
        %v1387 = vunpack.c.l.s4 1983009808
        %v1388 = vunpack.c.0.s8 %v1387
        %v1389 = vlaneseq
        %v1390 = vshrl.u32 %v1389, 7
        %v1391 = vsub.s32 %v1388, %v1390
        %v1392 = vrot.slane %v1385, %v1391
        %v1393 = vcombine.low %v1365, %v1372
        %v1395 = vunpack.c.l.s4 1983009808
        %v1396 = vunpack.c.0.s8 %v1395
        %v1397 = vlaneseq
        %v1398 = vshrl.u32 %v1397, 7
        %v1399 = vsub.s32 %v1396, %v1398
        %v1400 = vrot.slane %v1393, %v1399
        %v1401 = vcombine.low %v1375, %v1376
        %v1403 = vunpack.c.l.s4 1983009808
        %v1404 = vunpack.c.0.s8 %v1403
        %v1405 = vlaneseq
        %v1406 = vshrl.u32 %v1405, 7
        %v1407 = vsub.s32 %v1404, %v1406
        %v1408 = vrot.slane %v1401, %v1407
        %v1409 = vcombine.low %v1384, %v1392
        %v1410 = vcombine.high %v1384, %v1392
        %v1412 = vunpack.c.l.s4 1934713408
        %v1413 = vunpack.c.0.s8 %v1412
        %v1414 = vlaneseq
        %v1415 = vshrl.u32 %v1414, 7
        %v1416 = vsub.s32 %v1413, %v1415
        %v1417 = vrot.slane %v1409, %v1416
        %v1419 = vunpack.c.l.s4 1934713408
        %v1420 = vunpack.c.0.s8 %v1419
        %v1421 = vlaneseq
        %v1422 = vshrl.u32 %v1421, 7
        %v1423 = vsub.s32 %v1420, %v1422
        %v1424 = vrot.slane %v1410, %v1423
        %v1425 = vcombine.low %v1400, %v1408
        %v1426 = vcombine.high %v1400, %v1408
        %v1428 = vunpack.c.l.s4 1934713408
        %v1429 = vunpack.c.0.s8 %v1428
        %v1430 = vlaneseq
        %v1431 = vshrl.u32 %v1430, 7
        %v1432 = vsub.s32 %v1429, %v1431
        %v1433 = vrot.slane %v1425, %v1432
        %v1435 = vunpack.c.l.s4 1934713408
        %v1436 = vunpack.c.0.s8 %v1435
        %v1437 = vlaneseq
        %v1438 = vshrl.u32 %v1437, 7
        %v1439 = vsub.s32 %v1436, %v1438
        %v1440 = vrot.slane %v1426, %v1439
        %v1441 = vcombine.low %v1417, %v1433
        %v1442 = vcombine.high %v1417, %v1433
        %v1443 = vcombine.low %v1424, %v1440
        %v1444 = vcombine.high %v1424, %v1440
        %v1445 = vpack.c.bf16 %v1149, %v1149
        %v1446 = vpack.c.bf16 %v1150, %v1150
        %v1447 = vpack.c.bf16 %v1151, %v1151
        %v1448 = vpack.c.bf16 %v1152, %v1152
        %v1449 = vpack.c.bf16 %v1295, %v1295
        %v1450 = vpack.c.bf16 %v1296, %v1296
        %v1451 = vpack.c.bf16 %v1297, %v1297
        %v1452 = vpack.c.bf16 %v1298, %v1298
        %vm1453 = vcmask 261120
        %v1455 = vsel %vm1453, %v1445, 0
        %v1458 = vsel %vm1453, %v1449, 0
        %1460 = vmatprep.subr.bf16.mxu0 0
        %1461 = vmatpush1.bf16.xpose.msra.mxu0 %v1458
        %1462 = vmatprep.subr.bf16.mxu0 0
        %1463 = vmatpush1.bf16.xpose.msra.mxu0 0
        %1464 = vmatprep.subr.bf16.mxu0 0
        %1465 = vmatpush1.bf16.xpose.msra.mxu0 0
        %1466 = vmatprep.subr.bf16.mxu0 0
        %1467 = vmatpush1.bf16.xpose.msra.mxu0 0
        %1468 = vmatprep.subr.bf16.mxu0 0
        %1469 = vmatpush1.bf16.xpose.msra.mxu0 0
        %1470 = vmatprep.subr.bf16.mxu0 0
        %1471 = vmatpush1.bf16.xpose.msra.mxu0 0
        %1472 = vmatprep.subr.bf16.mxu0 0
        %1473 = vmatpush1.bf16.xpose.msra.mxu0 0
        %1474 = vmatprep.subr.bf16.mxu0 0
        %1475 = vmatpush1.bf16.xpose.msra.mxu0 0
        %1476 = vmatprep.subr.bf16.mxu0 0
        %1477 = vmatpush1.bf16.xpose.msra.mxu0 0
        %1478 = vmatprep.subr.bf16.mxu0 0
        %1479 = vmatpush1.bf16.xpose.msra.mxu0 0
        %1480 = vmatprep.subr.bf16.mxu0 0
        %1481 = vmatpush1.bf16.xpose.msra.mxu0 0
        %1482 = vmatprep.subr.bf16.mxu0 0
        %1483 = vmatpush1.bf16.xpose.msra.mxu0 0
        %1484 = vmatprep.subr.bf16.mxu0 0
        %1485 = vmatpush1.bf16.xpose.msra.mxu0 0
        %1486 = vmatprep.subr.bf16.mxu0 0
        %1487 = vmatpush1.bf16.xpose.msra.mxu0 0
        %1488 = vmatprep.subr.bf16.mxu0 0
        %1489 = vmatpush1.bf16.xpose.msra.mxu0 0
        %1490 = vmatprep.subr.bf16.mxu0 0
        %1491 = vmatpush1.bf16.xpose.msra.mxu0 0
        %1492 = vmatprep.mubr.bf16.mxu0 0
        %1493 = vmatmul.mubr.bf16.gmra.mrb[0].mxu0 %v1455
        %v1494 = vpop.f32.mrb[0].mxu0
        %v1495 = vadd.f32 0.0, %v1494
        %v1496 = vpop.f32.mrb[0].mxu0
        %v1497 = vpop.f32.mrb[0].mxu0
        %v1498 = vpop.f32.mrb[0].mxu0
        %1499 = vdwg.mxu0
        %v1501 = vsel %vm1453, %v1446, 0
        %v1504 = vsel %vm1453, %v1450, 0
        %1506 = vmatprep.subr.bf16.mxu0 0
        %1507 = vmatpush1.bf16.xpose.msra.mxu0 %v1504
        %1508 = vmatprep.subr.bf16.mxu0 0
        %1509 = vmatpush1.bf16.xpose.msra.mxu0 0
        %1510 = vmatprep.subr.bf16.mxu0 0
        %1511 = vmatpush1.bf16.xpose.msra.mxu0 0
        %1512 = vmatprep.subr.bf16.mxu0 0
        %1513 = vmatpush1.bf16.xpose.msra.mxu0 0
        %1514 = vmatprep.subr.bf16.mxu0 0
        %1515 = vmatpush1.bf16.xpose.msra.mxu0 0
        %1516 = vmatprep.subr.bf16.mxu0 0
        %1517 = vmatpush1.bf16.xpose.msra.mxu0 0
        %1518 = vmatprep.subr.bf16.mxu0 0
        %1519 = vmatpush1.bf16.xpose.msra.mxu0 0
        %1520 = vmatprep.subr.bf16.mxu0 0
        %1521 = vmatpush1.bf16.xpose.msra.mxu0 0
        %1522 = vmatprep.subr.bf16.mxu0 0
        %1523 = vmatpush1.bf16.xpose.msra.mxu0 0
        %1524 = vmatprep.subr.bf16.mxu0 0
        %1525 = vmatpush1.bf16.xpose.msra.mxu0 0
        %1526 = vmatprep.subr.bf16.mxu0 0
        %1527 = vmatpush1.bf16.xpose.msra.mxu0 0
        %1528 = vmatprep.subr.bf16.mxu0 0
        %1529 = vmatpush1.bf16.xpose.msra.mxu0 0
        %1530 = vmatprep.subr.bf16.mxu0 0
        %1531 = vmatpush1.bf16.xpose.msra.mxu0 0
        %1532 = vmatprep.subr.bf16.mxu0 0
        %1533 = vmatpush1.bf16.xpose.msra.mxu0 0
        %1534 = vmatprep.subr.bf16.mxu0 0
        %1535 = vmatpush1.bf16.xpose.msra.mxu0 0
        %1536 = vmatprep.subr.bf16.mxu0 0
        %1537 = vmatpush1.bf16.xpose.msra.mxu0 0
        %1538 = vmatprep.mubr.bf16.mxu0 0
        %1539 = vmatmul.mubr.bf16.gmra.mrb[0].mxu0 %v1501
        %v1540 = vpop.f32.mrb[0].mxu0
        %v1541 = vadd.f32 0.0, %v1540
        %v1542 = vpop.f32.mrb[0].mxu0
        %v1543 = vpop.f32.mrb[0].mxu0
        %v1544 = vpop.f32.mrb[0].mxu0
        %1545 = vdwg.mxu0
        %v1547 = vsel %vm1453, %v1447, 0
        %v1550 = vsel %vm1453, %v1451, 0
        %1552 = vmatprep.subr.bf16.mxu0 0
        %1553 = vmatpush1.bf16.xpose.msra.mxu0 %v1550
        %1554 = vmatprep.subr.bf16.mxu0 0
        %1555 = vmatpush1.bf16.xpose.msra.mxu0 0
        %1556 = vmatprep.subr.bf16.mxu0 0
        %1557 = vmatpush1.bf16.xpose.msra.mxu0 0
        %1558 = vmatprep.subr.bf16.mxu0 0
        %1559 = vmatpush1.bf16.xpose.msra.mxu0 0
        %1560 = vmatprep.subr.bf16.mxu0 0
        %1561 = vmatpush1.bf16.xpose.msra.mxu0 0
        %1562 = vmatprep.subr.bf16.mxu0 0
        %1563 = vmatpush1.bf16.xpose.msra.mxu0 0
        %1564 = vmatprep.subr.bf16.mxu0 0
        %1565 = vmatpush1.bf16.xpose.msra.mxu0 0
        %1566 = vmatprep.subr.bf16.mxu0 0
        %1567 = vmatpush1.bf16.xpose.msra.mxu0 0
        %1568 = vmatprep.subr.bf16.mxu0 0
        %1569 = vmatpush1.bf16.xpose.msra.mxu0 0
        %1570 = vmatprep.subr.bf16.mxu0 0
        %1571 = vmatpush1.bf16.xpose.msra.mxu0 0
        %1572 = vmatprep.subr.bf16.mxu0 0
        %1573 = vmatpush1.bf16.xpose.msra.mxu0 0
        %1574 = vmatprep.subr.bf16.mxu0 0
        %1575 = vmatpush1.bf16.xpose.msra.mxu0 0
        %1576 = vmatprep.subr.bf16.mxu0 0
        %1577 = vmatpush1.bf16.xpose.msra.mxu0 0
        %1578 = vmatprep.subr.bf16.mxu0 0
        %1579 = vmatpush1.bf16.xpose.msra.mxu0 0
        %1580 = vmatprep.subr.bf16.mxu0 0
        %1581 = vmatpush1.bf16.xpose.msra.mxu0 0
        %1582 = vmatprep.subr.bf16.mxu0 0
        %1583 = vmatpush1.bf16.xpose.msra.mxu0 0
        %1584 = vmatprep.mubr.bf16.mxu0 0
        %1585 = vmatmul.mubr.bf16.gmra.mrb[0].mxu0 %v1547
        %v1586 = vpop.f32.mrb[0].mxu0
        %v1587 = vadd.f32 0.0, %v1586
        %v1588 = vpop.f32.mrb[0].mxu0
        %v1589 = vpop.f32.mrb[0].mxu0
        %v1590 = vpop.f32.mrb[0].mxu0
        %1591 = vdwg.mxu0
        %v1593 = vsel %vm1453, %v1448, 0
        %v1596 = vsel %vm1453, %v1452, 0
        %1598 = vmatprep.subr.bf16.mxu0 0
        %1599 = vmatpush1.bf16.xpose.msra.mxu0 %v1596
        %1600 = vmatprep.subr.bf16.mxu0 0
        %1601 = vmatpush1.bf16.xpose.msra.mxu0 0
        %1602 = vmatprep.subr.bf16.mxu0 0
        %1603 = vmatpush1.bf16.xpose.msra.mxu0 0
        %1604 = vmatprep.subr.bf16.mxu0 0
        %1605 = vmatpush1.bf16.xpose.msra.mxu0 0
        %1606 = vmatprep.subr.bf16.mxu0 0
        %1607 = vmatpush1.bf16.xpose.msra.mxu0 0
        %1608 = vmatprep.subr.bf16.mxu0 0
        %1609 = vmatpush1.bf16.xpose.msra.mxu0 0
        %1610 = vmatprep.subr.bf16.mxu0 0
        %1611 = vmatpush1.bf16.xpose.msra.mxu0 0
        %1612 = vmatprep.subr.bf16.mxu0 0
        %1613 = vmatpush1.bf16.xpose.msra.mxu0 0
        %1614 = vmatprep.subr.bf16.mxu0 0
        %1615 = vmatpush1.bf16.xpose.msra.mxu0 0
        %1616 = vmatprep.subr.bf16.mxu0 0
        %1617 = vmatpush1.bf16.xpose.msra.mxu0 0
        %1618 = vmatprep.subr.bf16.mxu0 0
        %1619 = vmatpush1.bf16.xpose.msra.mxu0 0
        %1620 = vmatprep.subr.bf16.mxu0 0
        %1621 = vmatpush1.bf16.xpose.msra.mxu0 0
        %1622 = vmatprep.subr.bf16.mxu0 0
        %1623 = vmatpush1.bf16.xpose.msra.mxu0 0
        %1624 = vmatprep.subr.bf16.mxu0 0
        %1625 = vmatpush1.bf16.xpose.msra.mxu0 0
        %1626 = vmatprep.subr.bf16.mxu0 0
        %1627 = vmatpush1.bf16.xpose.msra.mxu0 0
        %1628 = vmatprep.subr.bf16.mxu0 0
        %1629 = vmatpush1.bf16.xpose.msra.mxu0 0
        %1630 = vmatprep.mubr.bf16.mxu0 0
        %1631 = vmatmul.mubr.bf16.gmra.mrb[0].mxu0 %v1593
        %v1632 = vpop.f32.mrb[0].mxu0
        %v1633 = vadd.f32 0.0, %v1632
        %v1634 = vpop.f32.mrb[0].mxu0
        %v1635 = vpop.f32.mrb[0].mxu0
        %v1636 = vpop.f32.mrb[0].mxu0
        %1637 = vdwg.mxu0
        %vm1638 = vcmask 64512
        %v1639 = vsel %vm1638, %v1495, -inf
        %1640 = vmax.xlane.f32.xlu0 %v1639
        %v1641 = vpop.xlane.xlu0 %1640
        %v1642 = vsel %vm1638, %v1541, -inf
        %1643 = vmax.xlane.f32.xlu0 %v1642
        %v1644 = vpop.xlane.xlu0 %1643
        %v1645 = vsel %vm1638, %v1587, -inf
        %1646 = vmax.xlane.f32.xlu0 %v1645
        %v1647 = vpop.xlane.xlu0 %1646
        %v1648 = vsel %vm1638, %v1633, -inf
        %1649 = vmax.xlane.f32.xlu0 %v1648
        %v1650 = vpop.xlane.xlu0 %1649
        %v1651 = vsub.f32 %v1495, %v1641
        %v1652 = vsub.f32 %v1541, %v1644
        %v1653 = vsub.f32 %v1587, %v1647
        %v1654 = vsub.f32 %v1633, %v1650
        %v1655 = vmul.f32 %v1651, 1.442695
        %v1656 = vpow.pop %v1655
        %v1657 = vmul.f32 %v1652, 1.442695
        %v1658 = vpow.pop %v1657
        %v1659 = vmul.f32 %v1653, 1.442695
        %v1660 = vpow.pop %v1659
        %v1661 = vmul.f32 %v1654, 1.442695
        %v1662 = vpow.pop %v1661
        %v1663 = vsel %vm1638, %v1656, 0.0
        %1664 = vadd.xlane.f32.xlu0 %v1663
        %v1665 = vpop.xlane.xlu0 %1664
        %v1666 = vsel %vm1638, %v1658, 0.0
        %1667 = vadd.xlane.f32.xlu0 %v1666
        %v1668 = vpop.xlane.xlu0 %1667
        %v1669 = vsel %vm1638, %v1660, 0.0
        %1670 = vadd.xlane.f32.xlu0 %v1669
        %v1671 = vpop.xlane.xlu0 %1670
        %v1672 = vsel %vm1638, %v1662, 0.0
        %1673 = vadd.xlane.f32.xlu0 %v1672
        %v1674 = vpop.xlane.xlu0 %1673
        %v1675 = vrcp.pop %v1665
        %v1676 = vrcp.pop %v1668
        %v1677 = vrcp.pop %v1671
        %v1678 = vrcp.pop %v1674
        %v1679 = vmul.f32 %v1656, %v1675
        %v1680 = vmul.f32 %v1658, %v1676
        %v1681 = vmul.f32 %v1660, %v1677
        %v1682 = vmul.f32 %v1662, %v1678
        %v1683 = vpack.c.bf16 %v1679, %v1679
        %v1684 = vpack.c.bf16 %v1680, %v1680
        %v1685 = vpack.c.bf16 %v1681, %v1681
        %v1686 = vpack.c.bf16 %v1682, %v1682
        %v1687 = vpack.c.bf16 %v1441, %v1441
        %v1688 = vpack.c.bf16 %v1442, %v1442
        %v1689 = vpack.c.bf16 %v1443, %v1443
        %v1690 = vpack.c.bf16 %v1444, %v1444
        %v1692 = vsel %vm1638, %v1683, 0
        %vm1694 = vcmask 1043456
        %v1696 = vsel %vm1694, %v1687, 0
        %1698 = vmatprep.subr.bf16.mxu0 0
        %1699 = vmatpush1.bf16.msra.mxu0 %v1696
        %1700 = vmatprep.subr.bf16.mxu0 0
        %1701 = vmatpush1.bf16.msra.mxu0 0
        %1702 = vmatprep.subr.bf16.mxu0 0
        %1703 = vmatpush1.bf16.msra.mxu0 0
        %1704 = vmatprep.subr.bf16.mxu0 0
        %1705 = vmatpush1.bf16.msra.mxu0 0
        %1706 = vmatprep.subr.bf16.mxu0 0
        %1707 = vmatpush1.bf16.msra.mxu0 0
        %1708 = vmatprep.subr.bf16.mxu0 0
        %1709 = vmatpush1.bf16.msra.mxu0 0
        %1710 = vmatprep.subr.bf16.mxu0 0
        %1711 = vmatpush1.bf16.msra.mxu0 0
        %1712 = vmatprep.subr.bf16.mxu0 0
        %1713 = vmatpush1.bf16.msra.mxu0 0
        %1714 = vmatprep.subr.bf16.mxu0 0
        %1715 = vmatpush1.bf16.msra.mxu0 0
        %1716 = vmatprep.subr.bf16.mxu0 0
        %1717 = vmatpush1.bf16.msra.mxu0 0
        %1718 = vmatprep.subr.bf16.mxu0 0
        %1719 = vmatpush1.bf16.msra.mxu0 0
        %1720 = vmatprep.subr.bf16.mxu0 0
        %1721 = vmatpush1.bf16.msra.mxu0 0
        %1722 = vmatprep.subr.bf16.mxu0 0
        %1723 = vmatpush1.bf16.msra.mxu0 0
        %1724 = vmatprep.subr.bf16.mxu0 0
        %1725 = vmatpush1.bf16.msra.mxu0 0
        %1726 = vmatprep.subr.bf16.mxu0 0
        %1727 = vmatpush1.bf16.msra.mxu0 0
        %1728 = vmatprep.subr.bf16.mxu0 0
        %1729 = vmatpush1.bf16.msra.mxu0 0
        %1730 = vmatprep.mubr.bf16.mxu0 0
        %1731 = vmatmul.mubr.bf16.gmra.mrb[0].mxu0 %v1692
        %v1732 = vpop.f32.mrb[0].mxu0
        %v1733 = vadd.f32 0.0, %v1732
        %v1734 = vpop.f32.mrb[0].mxu0
        %v1735 = vpop.f32.mrb[0].mxu0
        %v1736 = vpop.f32.mrb[0].mxu0
        %1737 = vdwg.mxu0
        %v1739 = vsel %vm1638, %v1684, 0
        %v1742 = vsel %vm1694, %v1688, 0
        %1744 = vmatprep.subr.bf16.mxu0 0
        %1745 = vmatpush1.bf16.msra.mxu0 %v1742
        %1746 = vmatprep.subr.bf16.mxu0 0
        %1747 = vmatpush1.bf16.msra.mxu0 0
        %1748 = vmatprep.subr.bf16.mxu0 0
        %1749 = vmatpush1.bf16.msra.mxu0 0
        %1750 = vmatprep.subr.bf16.mxu0 0
        %1751 = vmatpush1.bf16.msra.mxu0 0
        %1752 = vmatprep.subr.bf16.mxu0 0
        %1753 = vmatpush1.bf16.msra.mxu0 0
        %1754 = vmatprep.subr.bf16.mxu0 0
        %1755 = vmatpush1.bf16.msra.mxu0 0
        %1756 = vmatprep.subr.bf16.mxu0 0
        %1757 = vmatpush1.bf16.msra.mxu0 0
        %1758 = vmatprep.subr.bf16.mxu0 0
        %1759 = vmatpush1.bf16.msra.mxu0 0
        %1760 = vmatprep.subr.bf16.mxu0 0
        %1761 = vmatpush1.bf16.msra.mxu0 0
        %1762 = vmatprep.subr.bf16.mxu0 0
        %1763 = vmatpush1.bf16.msra.mxu0 0
        %1764 = vmatprep.subr.bf16.mxu0 0
        %1765 = vmatpush1.bf16.msra.mxu0 0
        %1766 = vmatprep.subr.bf16.mxu0 0
        %1767 = vmatpush1.bf16.msra.mxu0 0
        %1768 = vmatprep.subr.bf16.mxu0 0
        %1769 = vmatpush1.bf16.msra.mxu0 0
        %1770 = vmatprep.subr.bf16.mxu0 0
        %1771 = vmatpush1.bf16.msra.mxu0 0
        %1772 = vmatprep.subr.bf16.mxu0 0
        %1773 = vmatpush1.bf16.msra.mxu0 0
        %1774 = vmatprep.subr.bf16.mxu0 0
        %1775 = vmatpush1.bf16.msra.mxu0 0
        %1776 = vmatprep.mubr.bf16.mxu0 0
        %1777 = vmatmul.mubr.bf16.gmra.mrb[0].mxu0 %v1739
        %v1778 = vpop.f32.mrb[0].mxu0
        %v1779 = vadd.f32 0.0, %v1778
        %v1780 = vpop.f32.mrb[0].mxu0
        %v1781 = vpop.f32.mrb[0].mxu0
        %v1782 = vpop.f32.mrb[0].mxu0
        %1783 = vdwg.mxu0
        %v1785 = vsel %vm1638, %v1685, 0
        %v1788 = vsel %vm1694, %v1689, 0
        %1790 = vmatprep.subr.bf16.mxu0 0
        %1791 = vmatpush1.bf16.msra.mxu0 %v1788
        %1792 = vmatprep.subr.bf16.mxu0 0
        %1793 = vmatpush1.bf16.msra.mxu0 0
        %1794 = vmatprep.subr.bf16.mxu0 0
        %1795 = vmatpush1.bf16.msra.mxu0 0
        %1796 = vmatprep.subr.bf16.mxu0 0
        %1797 = vmatpush1.bf16.msra.mxu0 0
        %1798 = vmatprep.subr.bf16.mxu0 0
        %1799 = vmatpush1.bf16.msra.mxu0 0
        %1800 = vmatprep.subr.bf16.mxu0 0
        %1801 = vmatpush1.bf16.msra.mxu0 0
        %1802 = vmatprep.subr.bf16.mxu0 0
        %1803 = vmatpush1.bf16.msra.mxu0 0
        %1804 = vmatprep.subr.bf16.mxu0 0
        %1805 = vmatpush1.bf16.msra.mxu0 0
        %1806 = vmatprep.subr.bf16.mxu0 0
        %1807 = vmatpush1.bf16.msra.mxu0 0
        %1808 = vmatprep.subr.bf16.mxu0 0
        %1809 = vmatpush1.bf16.msra.mxu0 0
        %1810 = vmatprep.subr.bf16.mxu0 0
        %1811 = vmatpush1.bf16.msra.mxu0 0
        %1812 = vmatprep.subr.bf16.mxu0 0
        %1813 = vmatpush1.bf16.msra.mxu0 0
        %1814 = vmatprep.subr.bf16.mxu0 0
        %1815 = vmatpush1.bf16.msra.mxu0 0
        %1816 = vmatprep.subr.bf16.mxu0 0
        %1817 = vmatpush1.bf16.msra.mxu0 0
        %1818 = vmatprep.subr.bf16.mxu0 0
        %1819 = vmatpush1.bf16.msra.mxu0 0
        %1820 = vmatprep.subr.bf16.mxu0 0
        %1821 = vmatpush1.bf16.msra.mxu0 0
        %1822 = vmatprep.mubr.bf16.mxu0 0
        %1823 = vmatmul.mubr.bf16.gmra.mrb[0].mxu0 %v1785
        %v1824 = vpop.f32.mrb[0].mxu0
        %v1825 = vadd.f32 0.0, %v1824
        %v1826 = vpop.f32.mrb[0].mxu0
        %v1827 = vpop.f32.mrb[0].mxu0
        %v1828 = vpop.f32.mrb[0].mxu0
        %1829 = vdwg.mxu0
        %v1831 = vsel %vm1638, %v1686, 0
        %v1834 = vsel %vm1694, %v1690, 0
        %1836 = vmatprep.subr.bf16.mxu0 0
        %1837 = vmatpush1.bf16.msra.mxu0 %v1834
        %1838 = vmatprep.subr.bf16.mxu0 0
        %1839 = vmatpush1.bf16.msra.mxu0 0
        %1840 = vmatprep.subr.bf16.mxu0 0
        %1841 = vmatpush1.bf16.msra.mxu0 0
        %1842 = vmatprep.subr.bf16.mxu0 0
        %1843 = vmatpush1.bf16.msra.mxu0 0
        %1844 = vmatprep.subr.bf16.mxu0 0
        %1845 = vmatpush1.bf16.msra.mxu0 0
        %1846 = vmatprep.subr.bf16.mxu0 0
        %1847 = vmatpush1.bf16.msra.mxu0 0
        %1848 = vmatprep.subr.bf16.mxu0 0
        %1849 = vmatpush1.bf16.msra.mxu0 0
        %1850 = vmatprep.subr.bf16.mxu0 0
        %1851 = vmatpush1.bf16.msra.mxu0 0
        %1852 = vmatprep.subr.bf16.mxu0 0
        %1853 = vmatpush1.bf16.msra.mxu0 0
        %1854 = vmatprep.subr.bf16.mxu0 0
        %1855 = vmatpush1.bf16.msra.mxu0 0
        %1856 = vmatprep.subr.bf16.mxu0 0
        %1857 = vmatpush1.bf16.msra.mxu0 0
        %1858 = vmatprep.subr.bf16.mxu0 0
        %1859 = vmatpush1.bf16.msra.mxu0 0
        %1860 = vmatprep.subr.bf16.mxu0 0
        %1861 = vmatpush1.bf16.msra.mxu0 0
        %1862 = vmatprep.subr.bf16.mxu0 0
        %1863 = vmatpush1.bf16.msra.mxu0 0
        %1864 = vmatprep.subr.bf16.mxu0 0
        %1865 = vmatpush1.bf16.msra.mxu0 0
        %1866 = vmatprep.subr.bf16.mxu0 0
        %1867 = vmatpush1.bf16.msra.mxu0 0
        %1868 = vmatprep.mubr.bf16.mxu0 0
        %1869 = vmatmul.mubr.bf16.gmra.mrb[0].mxu0 %v1831
        %v1870 = vpop.f32.mrb[0].mxu0
        %v1871 = vadd.f32 0.0, %v1870
        %v1872 = vpop.f32.mrb[0].mxu0
        %v1873 = vpop.f32.mrb[0].mxu0
        %v1874 = vpop.f32.mrb[0].mxu0
        %1875 = vdwg.mxu0
        %v1876 = vcombine.low %v1733, %v1825
        %v1877 = vcombine.high %v1733, %v1825
        %v1879 = vunpack.c.l.s4 1983009808
        %v1880 = vunpack.c.0.s8 %v1879
        %v1881 = vlaneseq
        %v1882 = vshrl.u32 %v1881, 7
        %v1883 = vsub.s32 %v1880, %v1882
        %v1884 = vrot.slane %v1876, %v1883
        %v1886 = vunpack.c.l.s4 1983009808
        %v1887 = vunpack.c.0.s8 %v1886
        %v1888 = vlaneseq
        %v1889 = vshrl.u32 %v1888, 7
        %v1890 = vsub.s32 %v1887, %v1889
        %v1891 = vrot.slane %v1877, %v1890
        %v1892 = vcombine.low %v1779, %v1871
        %v1893 = vcombine.high %v1779, %v1871
        %v1895 = vunpack.c.l.s4 1983009808
        %v1896 = vunpack.c.0.s8 %v1895
        %v1897 = vlaneseq
        %v1898 = vshrl.u32 %v1897, 7
        %v1899 = vsub.s32 %v1896, %v1898
        %v1900 = vrot.slane %v1892, %v1899
        %v1902 = vunpack.c.l.s4 1983009808
        %v1903 = vunpack.c.0.s8 %v1902
        %v1904 = vlaneseq
        %v1905 = vshrl.u32 %v1904, 7
        %v1906 = vsub.s32 %v1903, %v1905
        %v1907 = vrot.slane %v1893, %v1906
        %v1908 = vcombine.low %v1884, %v1900
        %v1909 = vcombine.high %v1884, %v1900
        %v1911 = vunpack.c.l.s4 1934713408
        %v1912 = vunpack.c.0.s8 %v1911
        %v1913 = vlaneseq
        %v1914 = vshrl.u32 %v1913, 7
        %v1915 = vsub.s32 %v1912, %v1914
        %v1916 = vrot.slane %v1908, %v1915
        %v1918 = vunpack.c.l.s4 1934713408
        %v1919 = vunpack.c.0.s8 %v1918
        %v1920 = vlaneseq
        %v1921 = vshrl.u32 %v1920, 7
        %v1922 = vsub.s32 %v1919, %v1921
        %v1923 = vrot.slane %v1909, %v1922
        %v1924 = vcombine.low %v1891, %v1907
        %v1925 = vcombine.high %v1891, %v1907
        %v1927 = vunpack.c.l.s4 1934713408
        %v1928 = vunpack.c.0.s8 %v1927
        %v1929 = vlaneseq
        %v1930 = vshrl.u32 %v1929, 7
        %v1931 = vsub.s32 %v1928, %v1930
        %v1932 = vrot.slane %v1924, %v1931
        %v1934 = vunpack.c.l.s4 1934713408
        %v1935 = vunpack.c.0.s8 %v1934
        %v1936 = vlaneseq
        %v1937 = vshrl.u32 %v1936, 7
        %v1938 = vsub.s32 %v1935, %v1937
        %v1939 = vrot.slane %v1925, %v1938
        %v1940 = vcombine.high %v1916, 0.0
        %v1941 = vcombine.high %v1923, 0.0
        %v1942 = vcombine.high %v1932, 0.0
        %v1943 = vcombine.high %v1939, 0.0
        %v1944 = vcombine.low %v1916, %v1923
        %v1946 = vunpack.c.l.s4 1983009808
        %v1947 = vunpack.c.0.s8 %v1946
        %v1948 = vlaneseq
        %v1949 = vshrl.u32 %v1948, 7
        %v1950 = vsub.s32 %v1947, %v1949
        %v1951 = vrot.slane %v1944, %v1950
        %v1952 = vcombine.low %v1940, %v1941
        %v1954 = vunpack.c.l.s4 1983009808
        %v1955 = vunpack.c.0.s8 %v1954
        %v1956 = vlaneseq
        %v1957 = vshrl.u32 %v1956, 7
        %v1958 = vsub.s32 %v1955, %v1957
        %v1959 = vrot.slane %v1952, %v1958
        %v1960 = vcombine.low %v1932, %v1939
        %v1962 = vunpack.c.l.s4 1983009808
        %v1963 = vunpack.c.0.s8 %v1962
        %v1964 = vlaneseq
        %v1965 = vshrl.u32 %v1964, 7
        %v1966 = vsub.s32 %v1963, %v1965
        %v1967 = vrot.slane %v1960, %v1966
        %v1968 = vcombine.low %v1942, %v1943
        %v1970 = vunpack.c.l.s4 1983009808
        %v1971 = vunpack.c.0.s8 %v1970
        %v1972 = vlaneseq
        %v1973 = vshrl.u32 %v1972, 7
        %v1974 = vsub.s32 %v1971, %v1973
        %v1975 = vrot.slane %v1968, %v1974
        %v1976 = vcombine.low %v1951, %v1959
        %v1977 = vcombine.high %v1951, %v1959
        %v1979 = vunpack.c.l.s4 1934713408
        %v1980 = vunpack.c.0.s8 %v1979
        %v1981 = vlaneseq
        %v1982 = vshrl.u32 %v1981, 7
        %v1983 = vsub.s32 %v1980, %v1982
        %v1984 = vrot.slane %v1976, %v1983
        %v1986 = vunpack.c.l.s4 1934713408
        %v1987 = vunpack.c.0.s8 %v1986
        %v1988 = vlaneseq
        %v1989 = vshrl.u32 %v1988, 7
        %v1990 = vsub.s32 %v1987, %v1989
        %v1991 = vrot.slane %v1977, %v1990
        %v1992 = vcombine.low %v1967, %v1975
        %v1993 = vcombine.high %v1967, %v1975
        %v1995 = vunpack.c.l.s4 1934713408
        %v1996 = vunpack.c.0.s8 %v1995
        %v1997 = vlaneseq
        %v1998 = vshrl.u32 %v1997, 7
        %v1999 = vsub.s32 %v1996, %v1998
        %v2000 = vrot.slane %v1992, %v1999
        %v2002 = vunpack.c.l.s4 1934713408
        %v2003 = vunpack.c.0.s8 %v2002
        %v2004 = vlaneseq
        %v2005 = vshrl.u32 %v2004, 7
        %v2006 = vsub.s32 %v2003, %v2005
        %v2007 = vrot.slane %v1993, %v2006
        %v2008 = vcombine.low %v1984, %v2000
        %v2009 = vcombine.high %v1984, %v2000
        %v2010 = vcombine.low %v1991, %v2007
        %v2011 = vcombine.high %v1991, %v2007
        %2013 = vrot.lane.b32.xlu0 %v2009, 32
        %v2014 = vpop.permute.xlu0 %2013
        %2017 = vrot.lane.b32.xlu0 %v2010, 64
        %v2018 = vpop.permute.xlu0 %2017
        %2021 = vrot.lane.b32.xlu0 %v2011, 96
        %v2022 = vpop.permute.xlu0 %2021
        %v2024 = vsel %vm1453, %v2008, %v2014
        %vm2025 = vcmask 523264
        %v2026 = vsel %vm2025, %v2024, %v2018
        %vm2027 = vcmask 785408
        %v2028 = vsel %vm2027, %v2026, %v2022
        %v2029 = vpack.c.bf16 %v2028, %v2028
        %v2030 = vld [vmem:[%s607] sm:$0xf]
        %v2031 = vld [vmem:[%s607 + $0x4] sm:$0xf]
        %v2032 = vld [vmem:[%s607 + $0x8] sm:$0xf]
        %v2033 = vld [vmem:[%s607 + $0xc] sm:$0xf]
        %v2034 = vld [vmem:[%s607 + $0x10] sm:$0xf]
        %v2035 = vld [vmem:[%s607 + $0x14] sm:$0xf]
        %v2036 = vld [vmem:[%s607 + $0x18] sm:$0xf]
        %v2037 = vld [vmem:[%s607 + $0x1c] sm:$0xf]
        %v2038 = vld [vmem:[%s607 + $0x20] sm:$0xf]
        %v2039 = vld [vmem:[%s607 + $0x24] sm:$0xf]
        %v2040 = vld [vmem:[%s607 + $0x28] sm:$0xf]
        %v2041 = vld [vmem:[%s607 + $0x2c] sm:$0xf]
        %v2042 = vld [vmem:[%s607 + $0x30] sm:$0xf]
        %v2043 = vld [vmem:[%s607 + $0x34] sm:$0xf]
        %v2044 = vld [vmem:[%s607 + $0x38] sm:$0xf]
        %v2045 = vld [vmem:[%s607 + $0x3c] sm:$0xf]
        %v2046 = vld [vmem:[%s720] sm:$0x1]
        %v2048 = vlaneseq
        %v2049 = vshrl.u32 %v2048, 7
        %v2050 = vsub.s32 0, %v2049
        %v2051 = vrot.slane %v2046, %v2050
        %v2069 = vunpack.c.l.b16 %v2030
        %v2070 = vunpack.c.l.b16 %v2031
        %v2071 = vunpack.c.l.b16 %v2032
        %v2072 = vunpack.c.l.b16 %v2033
        %v2073 = vunpack.c.l.b16 %v2034
        %v2074 = vunpack.c.l.b16 %v2035
        %v2075 = vunpack.c.l.b16 %v2036
        %v2076 = vunpack.c.l.b16 %v2037
        %v2077 = vunpack.c.l.b16 %v2038
        %v2078 = vunpack.c.l.b16 %v2039
        %v2079 = vunpack.c.l.b16 %v2040
        %v2080 = vunpack.c.l.b16 %v2041
        %v2081 = vunpack.c.l.b16 %v2042
        %v2082 = vunpack.c.l.b16 %v2043
        %v2083 = vunpack.c.l.b16 %v2044
        %v2084 = vunpack.c.l.b16 %v2045
        %v2085 = vpack.c.b16 %v2070, %v2069
        %v2086 = vpack.c.b16 %v2072, %v2071
        %v2087 = vpack.c.b16 %v2074, %v2073
        %v2088 = vpack.c.b16 %v2076, %v2075
        %v2089 = vpack.c.b16 %v2078, %v2077
        %v2090 = vpack.c.b16 %v2080, %v2079
        %v2091 = vpack.c.b16 %v2082, %v2081
        %v2092 = vpack.c.b16 %v2084, %v2083
        %2101 = vmatprep.subr.bf16.mxu0 0
        %2102 = vmatpush1.bf16.msra.mxu0 %v2085
        %2103 = vmatprep.subr.bf16.mxu0 0
        %2104 = vmatpush1.bf16.msra.mxu0 %v2086
        %2105 = vmatprep.subr.bf16.mxu0 0
        %2106 = vmatpush1.bf16.msra.mxu0 %v2087
        %2107 = vmatprep.subr.bf16.mxu0 0
        %2108 = vmatpush1.bf16.msra.mxu0 %v2088
        %2109 = vmatprep.subr.bf16.mxu0 0
        %2110 = vmatpush1.bf16.msra.mxu0 %v2089
        %2111 = vmatprep.subr.bf16.mxu0 0
        %2112 = vmatpush1.bf16.msra.mxu0 %v2090
        %2113 = vmatprep.subr.bf16.mxu0 0
        %2114 = vmatpush1.bf16.msra.mxu0 %v2091
        %2115 = vmatprep.subr.bf16.mxu0 0
        %2116 = vmatpush1.bf16.msra.mxu0 %v2092
        %2117 = vmatprep.subr.bf16.mxu0 0
        %2118 = vmatpush1.bf16.msra.mxu0 0
        %2119 = vmatprep.subr.bf16.mxu0 0
        %2120 = vmatpush1.bf16.msra.mxu0 0
        %2121 = vmatprep.subr.bf16.mxu0 0
        %2122 = vmatpush1.bf16.msra.mxu0 0
        %2123 = vmatprep.subr.bf16.mxu0 0
        %2124 = vmatpush1.bf16.msra.mxu0 0
        %2125 = vmatprep.subr.bf16.mxu0 0
        %2126 = vmatpush1.bf16.msra.mxu0 0
        %2127 = vmatprep.subr.bf16.mxu0 0
        %2128 = vmatpush1.bf16.msra.mxu0 0
        %2129 = vmatprep.subr.bf16.mxu0 0
        %2130 = vmatpush1.bf16.msra.mxu0 0
        %2131 = vmatprep.subr.bf16.mxu0 0
        %2132 = vmatpush1.bf16.msra.mxu0 0
        %2133 = vmatprep.mubr.bf16.mxu0 0
        %2134 = vmatmul.mubr.bf16.gmra.mrb[0].mxu0 %v2029
        %v2135 = vpop.f32.mrb[0].mxu0
        %v2136 = vadd.f32 %v2051, %v2135
        %v2137 = vpop.f32.mrb[0].mxu0
        %v2138 = vpop.f32.mrb[0].mxu0
        %v2139 = vpop.f32.mrb[0].mxu0
        %2140 = vdwg.mxu0
        %v2141 = vadd.f32 %v747, %v2136
        %v2142 = vld [vmem:[%s723] sm:$0x1]
        %v2143 = vld [vmem:[%s726] sm:$0x1]
        %2144 = vadd.xlane.f32.xlu0 %v2141
        %v2145 = vpop.xlane.xlu0 %2144
        %v2146 = vrcp.pop 128.0
        %v2147 = vmul.f32 %v2145, %v2146
        %v2148 = vsub.f32 %v2141, %v2147
        %v2149 = vmul.f32 %v2148, %v2148
        %2150 = vadd.xlane.f32.xlu0 %v2149
        %v2151 = vpop.xlane.xlu0 %2150
        %v2152 = vmul.f32 %v2151, %v2146
        %v2153 = vadd.f32 %v2152, 1e-05
        %v2154 = vrsqrt.pop %v2153
        %v2155 = vmul.f32 %v2148, %v2154
        %v2157 = vlaneseq
        %v2158 = vshrl.u32 %v2157, 7
        %v2159 = vsub.s32 0, %v2158
        %v2160 = vrot.slane %v2142, %v2159
        %v2162 = vmul.f32 %v2155, %v2160
        %v2164 = vlaneseq
        %v2165 = vshrl.u32 %v2164, 7
        %v2166 = vsub.s32 0, %v2165
        %v2167 = vrot.slane %v2143, %v2166
        %v2169 = vadd.f32 %v2162, %v2167
        %v2170 = vpack.c.bf16 %v2169, %v2169
        %v2171 = vld [vmem:[%s616] sm:$0xff]
        %v2172 = vld [vmem:[%s616 + $0x8] sm:$0xff]
        %v2173 = vld [vmem:[%s616 + $0x10] sm:$0xff]
        %v2174 = vld [vmem:[%s616 + $0x18] sm:$0xff]
        %v2175 = vld [vmem:[%s616 + $0x20] sm:$0xff]
        %v2176 = vld [vmem:[%s616 + $0x28] sm:$0xff]
        %v2177 = vld [vmem:[%s616 + $0x30] sm:$0xff]
        %v2178 = vld [vmem:[%s616 + $0x38] sm:$0xff]
        %v2179 = vld [vmem:[%s616 + $0x40] sm:$0xff]
        %v2180 = vld [vmem:[%s616 + $0x48] sm:$0xff]
        %v2181 = vld [vmem:[%s616 + $0x50] sm:$0xff]
        %v2182 = vld [vmem:[%s616 + $0x58] sm:$0xff]
        %v2183 = vld [vmem:[%s616 + $0x60] sm:$0xff]
        %v2184 = vld [vmem:[%s616 + $0x68] sm:$0xff]
        %v2185 = vld [vmem:[%s616 + $0x70] sm:$0xff]
        %v2186 = vld [vmem:[%s616 + $0x78] sm:$0xff]
        %v2187 = vld [vmem:[%s730] sm:$0x3]
        %v2189 = vlaneseq
        %v2190 = vshrl.u32 %v2189, 7
        %v2191 = vsub.s32 0, %v2190
        %v2192 = vrot.slane %v2187, %v2191
        %v2193 = vlaneseq
        %v2194 = vshrl.u32 %v2193, 7
        %v2195 = vsub.s32 1, %v2194
        %v2196 = vrot.slane %v2187, %v2195
        %v2215 = vunpack.c.l.b16 %v2171
        %v2216 = vunpack.c.h.b16 %v2171
        %v2217 = vunpack.c.l.b16 %v2172
        %v2218 = vunpack.c.h.b16 %v2172
        %v2219 = vunpack.c.l.b16 %v2173
        %v2220 = vunpack.c.h.b16 %v2173
        %v2221 = vunpack.c.l.b16 %v2174
        %v2222 = vunpack.c.h.b16 %v2174
        %v2223 = vunpack.c.l.b16 %v2175
        %v2224 = vunpack.c.h.b16 %v2175
        %v2225 = vunpack.c.l.b16 %v2176
        %v2226 = vunpack.c.h.b16 %v2176
        %v2227 = vunpack.c.l.b16 %v2177
        %v2228 = vunpack.c.h.b16 %v2177
        %v2229 = vunpack.c.l.b16 %v2178
        %v2230 = vunpack.c.h.b16 %v2178
        %v2231 = vunpack.c.l.b16 %v2179
        %v2232 = vunpack.c.h.b16 %v2179
        %v2233 = vunpack.c.l.b16 %v2180
        %v2234 = vunpack.c.h.b16 %v2180
        %v2235 = vunpack.c.l.b16 %v2181
        %v2236 = vunpack.c.h.b16 %v2181
        %v2237 = vunpack.c.l.b16 %v2182
        %v2238 = vunpack.c.h.b16 %v2182
        %v2239 = vunpack.c.l.b16 %v2183
        %v2240 = vunpack.c.h.b16 %v2183
        %v2241 = vunpack.c.l.b16 %v2184
        %v2242 = vunpack.c.h.b16 %v2184
        %v2243 = vunpack.c.l.b16 %v2185
        %v2244 = vunpack.c.h.b16 %v2185
        %v2245 = vunpack.c.l.b16 %v2186
        %v2246 = vunpack.c.h.b16 %v2186
        %v2247 = vpack.c.b16 %v2217, %v2215
        %v2248 = vpack.c.b16 %v2218, %v2216
        %v2249 = vpack.c.b16 %v2221, %v2219
        %v2250 = vpack.c.b16 %v2222, %v2220
        %v2251 = vpack.c.b16 %v2225, %v2223
        %v2252 = vpack.c.b16 %v2226, %v2224
        %v2253 = vpack.c.b16 %v2229, %v2227
        %v2254 = vpack.c.b16 %v2230, %v2228
        %v2255 = vpack.c.b16 %v2233, %v2231
        %v2256 = vpack.c.b16 %v2234, %v2232
        %v2257 = vpack.c.b16 %v2237, %v2235
        %v2258 = vpack.c.b16 %v2238, %v2236
        %v2259 = vpack.c.b16 %v2241, %v2239
        %v2260 = vpack.c.b16 %v2242, %v2240
        %v2261 = vpack.c.b16 %v2245, %v2243
        %v2262 = vpack.c.b16 %v2246, %v2244
        %2279 = vmatprep.subr.bf16.mxu0 %v2248
        %2280 = vmatpush1.bf16.msra.mxu0 %v2247
        %2281 = vmatprep.subr.bf16.mxu0 %v2250
        %2282 = vmatpush1.bf16.msra.mxu0 %v2249
        %2283 = vmatprep.subr.bf16.mxu0 %v2252
        %2284 = vmatpush1.bf16.msra.mxu0 %v2251
        %2285 = vmatprep.subr.bf16.mxu0 %v2254
        %2286 = vmatpush1.bf16.msra.mxu0 %v2253
        %2287 = vmatprep.subr.bf16.mxu0 %v2256
        %2288 = vmatpush1.bf16.msra.mxu0 %v2255
        %2289 = vmatprep.subr.bf16.mxu0 %v2258
        %2290 = vmatpush1.bf16.msra.mxu0 %v2257
        %2291 = vmatprep.subr.bf16.mxu0 %v2260
        %2292 = vmatpush1.bf16.msra.mxu0 %v2259
        %2293 = vmatprep.subr.bf16.mxu0 %v2262
        %2294 = vmatpush1.bf16.msra.mxu0 %v2261
        %2295 = vmatprep.subr.bf16.mxu0 0
        %2296 = vmatpush1.bf16.msra.mxu0 0
        %2297 = vmatprep.subr.bf16.mxu0 0
        %2298 = vmatpush1.bf16.msra.mxu0 0
        %2299 = vmatprep.subr.bf16.mxu0 0
        %2300 = vmatpush1.bf16.msra.mxu0 0
        %2301 = vmatprep.subr.bf16.mxu0 0
        %2302 = vmatpush1.bf16.msra.mxu0 0
        %2303 = vmatprep.subr.bf16.mxu0 0
        %2304 = vmatpush1.bf16.msra.mxu0 0
        %2305 = vmatprep.subr.bf16.mxu0 0
        %2306 = vmatpush1.bf16.msra.mxu0 0
        %2307 = vmatprep.subr.bf16.mxu0 0
        %2308 = vmatpush1.bf16.msra.mxu0 0
        %2309 = vmatprep.subr.bf16.mxu0 0
        %2310 = vmatpush1.bf16.msra.mxu0 0
        %2311 = vmatprep.mubr.bf16.mxu0 0
        %2312 = vmatmul.mubr.bf16.gmra.mrb[0].mxu0 %v2170
        %v2313 = vpop.f32.mrb[0].mxu0
        %v2314 = vadd.f32 %v2192, %v2313
        %v2315 = vpop.f32.mrb[0].mxu0
        %v2316 = vadd.f32 %v2196, %v2315
        %v2317 = vpop.f32.mrb[0].mxu0
        %v2318 = vpop.f32.mrb[0].mxu0
        %2319 = vdwg.mxu0
        %v2320 = vmax.f32 %v2314, 0.0
        %v2321 = vmax.f32 %v2316, 0.0
        %v2322 = vpack.c.bf16 %v2320, %v2320
        %v2323 = vpack.c.bf16 %v2321, %v2321
        %v2324 = vld [vmem:[%s625] sm:$0xf]
        %v2325 = vld [vmem:[%s625 + $0x4] sm:$0xf]
        %v2326 = vld [vmem:[%s625 + $0x8] sm:$0xf]
        %v2327 = vld [vmem:[%s625 + $0xc] sm:$0xf]
        %v2328 = vld [vmem:[%s625 + $0x10] sm:$0xf]
        %v2329 = vld [vmem:[%s625 + $0x14] sm:$0xf]
        %v2330 = vld [vmem:[%s625 + $0x18] sm:$0xf]
        %v2331 = vld [vmem:[%s625 + $0x1c] sm:$0xf]
        %v2332 = vld [vmem:[%s625 + $0x20] sm:$0xf]
        %v2333 = vld [vmem:[%s625 + $0x24] sm:$0xf]
        %v2334 = vld [vmem:[%s625 + $0x28] sm:$0xf]
        %v2335 = vld [vmem:[%s625 + $0x2c] sm:$0xf]
        %v2336 = vld [vmem:[%s625 + $0x30] sm:$0xf]
        %v2337 = vld [vmem:[%s625 + $0x34] sm:$0xf]
        %v2338 = vld [vmem:[%s625 + $0x38] sm:$0xf]
        %v2339 = vld [vmem:[%s625 + $0x3c] sm:$0xf]
        %v2340 = vld [vmem:[%s625 + $0x40] sm:$0xf]
        %v2341 = vld [vmem:[%s625 + $0x44] sm:$0xf]
        %v2342 = vld [vmem:[%s625 + $0x48] sm:$0xf]
        %v2343 = vld [vmem:[%s625 + $0x4c] sm:$0xf]
        %v2344 = vld [vmem:[%s625 + $0x50] sm:$0xf]
        %v2345 = vld [vmem:[%s625 + $0x54] sm:$0xf]
        %v2346 = vld [vmem:[%s625 + $0x58] sm:$0xf]
        %v2347 = vld [vmem:[%s625 + $0x5c] sm:$0xf]
        %v2348 = vld [vmem:[%s625 + $0x60] sm:$0xf]
        %v2349 = vld [vmem:[%s625 + $0x64] sm:$0xf]
        %v2350 = vld [vmem:[%s625 + $0x68] sm:$0xf]
        %v2351 = vld [vmem:[%s625 + $0x6c] sm:$0xf]
        %v2352 = vld [vmem:[%s625 + $0x70] sm:$0xf]
        %v2353 = vld [vmem:[%s625 + $0x74] sm:$0xf]
        %v2354 = vld [vmem:[%s625 + $0x78] sm:$0xf]
        %v2355 = vld [vmem:[%s625 + $0x7c] sm:$0xf]
        %v2356 = vld [vmem:[%s733] sm:$0x1]
        %v2358 = vlaneseq
        %v2359 = vshrl.u32 %v2358, 7
        %v2360 = vsub.s32 0, %v2359
        %v2361 = vrot.slane %v2356, %v2360
        %v2395 = vunpack.c.l.b16 %v2324
        %v2396 = vunpack.c.l.b16 %v2325
        %v2397 = vunpack.c.l.b16 %v2326
        %v2398 = vunpack.c.l.b16 %v2327
        %v2399 = vunpack.c.l.b16 %v2328
        %v2400 = vunpack.c.l.b16 %v2329
        %v2401 = vunpack.c.l.b16 %v2330
        %v2402 = vunpack.c.l.b16 %v2331
        %v2403 = vunpack.c.l.b16 %v2332
        %v2404 = vunpack.c.l.b16 %v2333
        %v2405 = vunpack.c.l.b16 %v2334
        %v2406 = vunpack.c.l.b16 %v2335
        %v2407 = vunpack.c.l.b16 %v2336
        %v2408 = vunpack.c.l.b16 %v2337
        %v2409 = vunpack.c.l.b16 %v2338
        %v2410 = vunpack.c.l.b16 %v2339
        %v2411 = vunpack.c.l.b16 %v2340
        %v2412 = vunpack.c.l.b16 %v2341
        %v2413 = vunpack.c.l.b16 %v2342
        %v2414 = vunpack.c.l.b16 %v2343
        %v2415 = vunpack.c.l.b16 %v2344
        %v2416 = vunpack.c.l.b16 %v2345
        %v2417 = vunpack.c.l.b16 %v2346
        %v2418 = vunpack.c.l.b16 %v2347
        %v2419 = vunpack.c.l.b16 %v2348
        %v2420 = vunpack.c.l.b16 %v2349
        %v2421 = vunpack.c.l.b16 %v2350
        %v2422 = vunpack.c.l.b16 %v2351
        %v2423 = vunpack.c.l.b16 %v2352
        %v2424 = vunpack.c.l.b16 %v2353
        %v2425 = vunpack.c.l.b16 %v2354
        %v2426 = vunpack.c.l.b16 %v2355
        %v2427 = vpack.c.b16 %v2396, %v2395
        %v2428 = vpack.c.b16 %v2398, %v2397
        %v2429 = vpack.c.b16 %v2400, %v2399
        %v2430 = vpack.c.b16 %v2402, %v2401
        %v2431 = vpack.c.b16 %v2404, %v2403
        %v2432 = vpack.c.b16 %v2406, %v2405
        %v2433 = vpack.c.b16 %v2408, %v2407
        %v2434 = vpack.c.b16 %v2410, %v2409
        %v2435 = vpack.c.b16 %v2412, %v2411
        %v2436 = vpack.c.b16 %v2414, %v2413
        %v2437 = vpack.c.b16 %v2416, %v2415
        %v2438 = vpack.c.b16 %v2418, %v2417
        %v2439 = vpack.c.b16 %v2420, %v2419
        %v2440 = vpack.c.b16 %v2422, %v2421
        %v2441 = vpack.c.b16 %v2424, %v2423
        %v2442 = vpack.c.b16 %v2426, %v2425
        %2459 = vmatprep.subr.bf16.mxu0 0
        %2460 = vmatpush1.bf16.msra.mxu0 %v2427
        %2461 = vmatprep.subr.bf16.mxu0 0
        %2462 = vmatpush1.bf16.msra.mxu0 %v2428
        %2463 = vmatprep.subr.bf16.mxu0 0
        %2464 = vmatpush1.bf16.msra.mxu0 %v2429
        %2465 = vmatprep.subr.bf16.mxu0 0
        %2466 = vmatpush1.bf16.msra.mxu0 %v2430
        %2467 = vmatprep.subr.bf16.mxu0 0
        %2468 = vmatpush1.bf16.msra.mxu0 %v2431
        %2469 = vmatprep.subr.bf16.mxu0 0
        %2470 = vmatpush1.bf16.msra.mxu0 %v2432
        %2471 = vmatprep.subr.bf16.mxu0 0
        %2472 = vmatpush1.bf16.msra.mxu0 %v2433
        %2473 = vmatprep.subr.bf16.mxu0 0
        %2474 = vmatpush1.bf16.msra.mxu0 %v2434
        %2475 = vmatprep.subr.bf16.mxu0 0
        %2476 = vmatpush1.bf16.msra.mxu0 %v2435
        %2477 = vmatprep.subr.bf16.mxu0 0
        %2478 = vmatpush1.bf16.msra.mxu0 %v2436
        %2479 = vmatprep.subr.bf16.mxu0 0
        %2480 = vmatpush1.bf16.msra.mxu0 %v2437
        %2481 = vmatprep.subr.bf16.mxu0 0
        %2482 = vmatpush1.bf16.msra.mxu0 %v2438
        %2483 = vmatprep.subr.bf16.mxu0 0
        %2484 = vmatpush1.bf16.msra.mxu0 %v2439
        %2485 = vmatprep.subr.bf16.mxu0 0
        %2486 = vmatpush1.bf16.msra.mxu0 %v2440
        %2487 = vmatprep.subr.bf16.mxu0 0
        %2488 = vmatpush1.bf16.msra.mxu0 %v2441
        %2489 = vmatprep.subr.bf16.mxu0 0
        %2490 = vmatpush1.bf16.msra.mxu0 %v2442
        %2491 = vmatprep.mubr.bf16.mxu0 %v2323
        %2492 = vmatmul.mubr.bf16.gmra.mrb[0].mxu0 %v2322
        %v2493 = vpop.f32.mrb[0].mxu0
        %v2494 = vadd.f32 %v2361, %v2493
        %v2495 = vpop.f32.mrb[0].mxu0
        %v2496 = vpop.f32.mrb[0].mxu0
        %v2497 = vpop.f32.mrb[0].mxu0
        %2498 = vdwg.mxu0
        %v2499 = vadd.f32 %v2169, %v2494
        %v2500 = vld [vmem:[%s736] sm:$0x1]
        %v2501 = vld [vmem:[%s739] sm:$0x1]
        %2502 = vadd.xlane.f32.xlu0 %v2499
        %v2503 = vpop.xlane.xlu0 %2502
        %v2504 = vmul.f32 %v2503, %v2146
        %v2505 = vsub.f32 %v2499, %v2504
        %v2506 = vmul.f32 %v2505, %v2505
        %2507 = vadd.xlane.f32.xlu0 %v2506
        %v2508 = vpop.xlane.xlu0 %2507
        %v2509 = vmul.f32 %v2508, %v2146
        %v2510 = vadd.f32 %v2509, 1e-05
        %v2511 = vrsqrt.pop %v2510
        %v2512 = vmul.f32 %v2505, %v2511
        %v2514 = vlaneseq
        %v2515 = vshrl.u32 %v2514, 7
        %v2516 = vsub.s32 0, %v2515
        %v2517 = vrot.slane %v2500, %v2516
        %v2519 = vmul.f32 %v2512, %v2517
        %v2521 = vlaneseq
        %v2522 = vshrl.u32 %v2521, 7
        %v2523 = vsub.s32 0, %v2522
        %v2524 = vrot.slane %v2501, %v2523
        %v2526 = vadd.f32 %v2519, %v2524
        %2527 = vst [vmem:[%s713] sm:$0xff] %v2526
        %s2528 = sand.u32 %s394, 1
        %s2529 = scalar_lea.sflag [#allocation4], %s2528
        %s2530 = sand.u32 %s394, 1
        %s2531 = smul.addr %s2530, 8
        %s2532 = scalar_lea.vmem [#allocation11], %s2531
        // Predicated region
        $region97: #{tpu_custom_call.1} parent=71 // pred_check
          %p2533 = pneg %p404
        $region98: #{tpu_custom_call.1} parent=71 // pred_check_branch
          %2535 = sbr.rel (%p2533) target = $region100
        $region99: #{tpu_custom_call.1} parent=71 // pred_region
          %s2537 = ssub.s32 128, 128
          %2538 = vsyncadd %s2529, %s2537
          %s2539 = smul.addr %s40, 128
          %s2540 = scalar_lea.hbm %s13, %s2539
          %s2542 = sshll.u32 %s2532, 4
          %s2543 = int_to_ptr.vmem [resolvable:$true] %s2542
          %2545 = dma.vmem_to_hbm [thread:$0]  %s2543, 128, %s2540, %s2529
        $region100: #{tpu_custom_call.1} parent=71 // pred_fallthru
          _
      $region72: #{tpu_custom_call.1} parent=5 // pred_fallthru
        _
      %p2546 = scmp.le.s32.totalorder 2, %s31
      // Predicated region
      $region101: #{tpu_custom_call.1} parent=5 // pred_check
        %p2547 = pneg %p2546
      $region102: #{tpu_custom_call.1} parent=5 // pred_check_branch
        %2549 = sbr.rel (%p2547) target = $region104
      $region103: #{tpu_custom_call.1} parent=5 // pred_region
        %s2550 = ssub.s32 %s31, 2
        // Predicated region
        $region105: #{tpu_custom_call.1} parent=103 // pred_check
          %p2551 = pneg %p410
        $region106: #{tpu_custom_call.1} parent=103 // pred_check_branch
          %2553 = sbr.rel (%p2551) target = $region108
        $region107: #{tpu_custom_call.1} parent=103 // pred_region
          %s2554 = sand.u32 %s395, 1
          %s2555 = scalar_lea.sflag [#allocation4], %s2554
          %s2556 = sand.u32 %s395, 1
          %s2557 = smul.addr %s2556, 8
          %s2558 = scalar_lea.vmem [#allocation11], %s2557
          %2559 = dma.done %s2555, 128
        $region108: #{tpu_custom_call.1} parent=103 // pred_fallthru
          _
      $region104: #{tpu_custom_call.1} parent=5 // pred_fallthru
        _
    $region6: #{tpu_custom_call.1} parent=1 // loop_footer
      %s35 = sadd.s32 1, %s31
    $region7: #{tpu_custom_call.1} parent=1 // loop_footer_branch
      %30 = sbr.rel target = $region3
    $region8: #{tpu_custom_call.1} parent=1 // loop_exit
      _
    %2560 = vsyncpa [#allocation3], 1
    %s2561 = scalar_lea.sflag [#allocation3], 1
    %2562 = vsyncpa %s2561, 1
    %2563 = vsyncpa [#allocation6], 1
    %s2564 = scalar_lea.sflag [#allocation6], 1
    %2565 = vsyncpa %s2564, 1
    %2566 = vsyncpa [#allocation9], 1
    %s2567 = scalar_lea.sflag [#allocation9], 1
    %2568 = vsyncpa %s2567, 1
    %2569 = vsyncpa [#allocation4], 1
    %s2570 = scalar_lea.sflag [#allocation4], 1
    %2571 = vsyncpa %s2570, 1

</llo_original>
